<compile_context>
chip_gen: v5e
topology: v5e:2x2
jax: 0.10.0
libtpu: 0.0.40
codegen_flags: <defaults>
</compile_context>

<pallas_src>
import functools

import jax
import jax.numpy as jnp
import numpy as np
from jax.experimental import pallas as pl
from jax.experimental.pallas import tpu as pltpu


# ----------------------------- small helpers --------------------------------
def _round_up(x, m):
    return (x + m - 1) // m * m


def _pick_tile(n, prefs):
    for p in prefs:
        if n % p == 0:
            return p
    return n


def _pad_axis(a, axis, new_size):
    pad = new_size - a.shape[axis]
    if pad == 0:
        return a
    widths = [(0, 0)] * a.ndim
    widths[axis] = (0, pad)
    return jnp.pad(a, widths)


def _pad_last(a, new_size):
    return _pad_axis(a, a.ndim - 1, new_size)


# PyTorch LSTM gate order is [i | f | g | o]; the kernel uses [i | f | o | g]
# so the three sigmoid gates form one contiguous slab.
_GATE_PERM = (0, 1, 3, 2)


def _prep_gate_cols(w, H, Hp):
    """Reorder gate columns [i|f|g|o] -> [i|f|o|g] and zero-pad each gate H->Hp.

    The zero padding is exact: padded gate columns (and whh's padded *rows*)
    are zero, so padded gate pre-activations are 0, c_pad stays 0 and
    h_pad = sigmoid(0) * tanh(0) = 0 for all time steps.
    """
    lead = w.shape[:-1]
    w4 = w.reshape(lead + (4, H))[..., _GATE_PERM, :]
    w4 = _pad_axis(w4, w4.ndim - 1, Hp)
    return w4.reshape(lead + (4 * Hp,))


def _resident_spec(block_shape, index_map):
    """Grid-invariant operand: single-buffered to halve its resident VMEM."""
    try:
        return pl.BlockSpec(block_shape, index_map, pipeline_mode=pl.Buffered(1))
    except (AttributeError, TypeError):   # older jax without pipeline_mode
        return pl.BlockSpec(block_shape, index_map)


def _vmem_limit(est_bytes):
    # Explicit scoped-VMEM budget: at least the 32 MiB default, 2x headroom
    # over the estimated resident footprint, capped at 100 MiB.
    return int(min(max(2 * est_bytes, 32 * 1024 * 1024), 100 * 1024 * 1024))


# ------------------------------- kernels -------------------------------------
def _lstm_kernel(Hp, Tb,
                 x_ref,      # (Bb, Tb, E)   embeddings for this block (param_dtype)
                 h0_ref,     # (Bb, Hp)      initial hidden state (f32)
                 c0_ref,     # (Bb, Hp)      initial cell state (f32)
                 wih_ref,    # (E, 4Hp)      input->gates  (pre-transposed, padded)
                 whh_ref,    # (Hp, 4Hp)     hidden->gates (pre-transposed, padded)
                 b_ref,      # (1, 4Hp)      combined bias (b_ih + b_hh), f32
                 hout_ref,   # (Bb, Tb, Hp)  per-step hidden outputs (param_dtype)
                 hfin_ref,   # (Bb, Hp)      final hidden state (f32)
                 cfin_ref,   # (Bb, Hp)      final cell state (f32)
                 h_sc,       # VMEM (Bb, Hp) recurrent hidden carry (f32)
                 c_sc):      # VMEM (Bb, Hp) recurrent cell carry (f32)
    tb = pl.program_id(1)          # time-block index (inner, sequential axis)

    @pl.when(tb == 0)
    def _():
        h_sc[...] = h0_ref[...]
        c_sc[...] = c0_ref[...]

    h = h_sc[...]
    c = c_sc[...]
    whh = whh_ref[...]

    Bb = x_ref.shape[0]
    E = x_ref.shape[2]

    # Hoisted input projection: one (Bb*Tb, E) @ (E, 4Hp) matmul per time block
    # fills the MXU with M = Bb*Tb rows (vs. M = Bb per step before), with the
    # combined bias folded in once.  f32 accumulation.
    xg = (jnp.dot(x_ref[...].reshape(Bb * Tb, E), wih_ref[...],
                  preferred_element_type=jnp.float32)
          + b_ref[0]).reshape(Bb, Tb, 4 * Hp)

    # Statically unrolled serial loop (Tb <= 32); h/c stay in vregs/f32.
    for i in range(Tb):
        gates = xg[:, i, :] + jnp.dot(h.astype(whh.dtype), whh,
                                      preferred_element_type=jnp.float32)
        # Gate columns reordered at prep time to [i | f | o | g]: one sigmoid
        # over the contiguous (Bb, 3Hp) slab + one tanh over the last Hp slab.
        sig = jax.nn.sigmoid(gates[:, :3 * Hp])
        i_g = sig[:, 0 * Hp:1 * Hp]
        f_g = sig[:, 1 * Hp:2 * Hp]
        o_g = sig[:, 2 * Hp:3 * Hp]
        g_g = jnp.tanh(gates[:, 3 * Hp:])
        c = f_g * c + i_g * g_g
        h = o_g * jnp.tanh(c)
        hout_ref[:, i, :] = h.astype(hout_ref.dtype)

    h_sc[...] = h
    c_sc[...] = c

    # Final state written once per batch block, on the last time block.
    # NOTE: correct because the constant (per-batch-block) output block index
    # defers HBM writeback to the end of the time axis -- do not change the
    # hfin/cfin out_specs without revisiting this.
    @pl.when(tb == pl.num_programs(1) - 1)
    def _():
        hfin_ref[...] = h
        cfin_ref[...] = c


def _decoder_kernel(h_ref,    # (tm, Hp)  param_dtype
                    w_ref,    # (Hp, tn)  param_dtype
                    b_ref,    # (1, tn)   f32
                    o_ref):   # (tm, tn)  f32
    o_ref[...] = (jnp.dot(h_ref[...].astype(w_ref.dtype), w_ref[...],
                          preferred_element_type=jnp.float32)
                  + b_ref[0]).astype(o_ref.dtype)


# ------------------------------- wrapper --------------------------------------
def lm_forward(tokens, embed_w, wih, whh, b, wdec, bdec,
               h0=None, c0=None, param_dtype=jnp.bfloat16):
    """Forward pass equivalent to MyModel.forward (eval mode).

    tokens : (B, T) int32
    embed_w: (V, E)
    wih    : (E, 4H)   (= PyTorch weight_ih_l0.T, gate order i,f,g,o)
    whh    : (H, 4H)   (= PyTorch weight_hh_l0.T)
    b      : (1, 4H)   (= bias_ih_l0 + bias_hh_l0)
    wdec   : (H, V)    (= decoder.weight.T)
    bdec   : (1, V)
    returns: decoded (B*T, V) f32, (h_final (1,B,H), c_final (1,B,H)) f32
    """
    B, T = tokens.shape
    E = embed_w.shape[1]
    H = whh.shape[0]
    V = wdec.shape[1]

    Hp = _round_up(H, 128)   # lane-aligned hidden width (padding is exact: stays 0)
    Vp = _round_up(V, 128)   # lane-dense decoder output width
    psize = jnp.dtype(param_dtype).itemsize

    # ---- parameter prep: gate reorder + pad + cast matmul operands ----------
    wih_p = _prep_gate_cols(wih, H, Hp).astype(param_dtype)                    # (E, 4Hp)
    whh_p = _prep_gate_cols(_pad_axis(whh, 0, Hp), H, Hp).astype(param_dtype)  # (Hp, 4Hp)
    b_p = _prep_gate_cols(b, H, Hp).astype(jnp.float32)                        # (1, 4Hp)
    wdec_p = _pad_last(_pad_axis(wdec, 0, Hp), Vp).astype(param_dtype)         # (Hp, Vp)
    bdec_p = _pad_last(bdec, Vp).astype(jnp.float32)                           # (1, Vp)

    if h0 is None:
        h0 = jnp.zeros((B, H), jnp.float32)
    if c0 is None:
        c0 = jnp.zeros((B, H), jnp.float32)
    h0_p = _pad_last(h0.astype(jnp.float32), Hp)
    c0_p = _pad_last(c0.astype(jnp.float32), Hp)

    # Embedding lookup in XLA (single gather); table cast once so x streams at
    # param_dtype width and the kernel never casts per step.
    # TODO(synk): nn.Dropout not applied (inference semantics, acts as identity).
    x = jnp.take(embed_w.astype(param_dtype), tokens, axis=0)                  # (B, T, E)

    # ---- recurrent kernel: grid = (batch blocks, time blocks) ---------------
    Tb = _pick_tile(T, (32, 16, 8, 4, 2, 1))     # bounded unroll / pre-gate size
    n_tb = T // Tb
    # Batch split only when both halves stay 8-sublane aligned (v7x dual-TC win;
    # no-op elsewhere).
    Bb = B // 2 if (B % 16 == 0) else B
    n_bb = B // Bb

    lstm_est = (2 * Bb * Tb * (E + Hp) * psize            # x + hout blocks (2-buf)
                + (E + Hp) * 4 * Hp * psize + 4 * Hp * 4  # wih, whh (1-buf), bias
                + 12 * Bb * Hp * 4                        # h0/c0/hfin/cfin + carries
                + Bb * Tb * 4 * Hp * 4)                   # f32 pre-gate block

    kernel = functools.partial(_lstm_kernel, Hp, Tb)

    hout, h_fin, c_fin = pl.pallas_call(
        kernel,
        out_shape=(jax.ShapeDtypeStruct((B, T, Hp), param_dtype),
                   jax.ShapeDtypeStruct((B, Hp), jnp.float32),
                   jax.ShapeDtypeStruct((B, Hp), jnp.float32)),
        grid_spec=pltpu.PrefetchScalarGridSpec(
            num_scalar_prefetch=0,
            grid=(n_bb, n_tb),
            in_specs=[
                pl.BlockSpec((Bb, Tb, E), lambda bb, t: (bb, t, 0)),   # x block
                pl.BlockSpec((Bb, Hp), lambda bb, t: (bb, 0)),         # h0
                pl.BlockSpec((Bb, Hp), lambda bb, t: (bb, 0)),         # c0
                _resident_spec((E, 4 * Hp), lambda bb, t: (0, 0)),     # wih (1-buf)
                _resident_spec((Hp, 4 * Hp), lambda bb, t: (0, 0)),    # whh (1-buf)
                _resident_spec((1, 4 * Hp), lambda bb, t: (0, 0)),     # bias (1-buf)
            ],
            out_specs=(
                pl.BlockSpec((Bb, Tb, Hp), lambda bb, t: (bb, t, 0)),  # per-step h
                pl.BlockSpec((Bb, Hp), lambda bb, t: (bb, 0)),         # final h
                pl.BlockSpec((Bb, Hp), lambda bb, t: (bb, 0)),         # final c
            ),
            scratch_shapes=[
                pltpu.VMEM((Bb, Hp), jnp.float32),   # h carry
                pltpu.VMEM((Bb, Hp), jnp.float32),   # c carry
            ],
        ),
        compiler_params=pltpu.CompilerParams(
            dimension_semantics=("parallel", "arbitrary"),   # batch ||, time serial
            vmem_limit_bytes=_vmem_limit(lstm_est)),
    )(x, h0_p, c0_p, wih_p, whh_p, b_p)

    # ---- decoder: one big MXU-shaped matmul, tiled over (M, Vp) --------------
    M = B * T
    h2d = hout.reshape(M, Hp)     # contiguous; matches output.contiguous().view(-1, H)
    tm = _pick_tile(M, (512, 256, 128, 64, 32, 16, 8))
    tn = _pick_tile(Vp, (512, 256, 128))
    dec_est = 2 * (tm * Hp + Hp * tn) * psize + 2 * (tm * tn + tn) * 4

    if Hp * Vp > M * Hp:
        # wdec is the big operand: vocab axis OUTER so each (Hp, tn) weight tile
        # streams from HBM exactly once; the smaller hout tiles are re-read.
        grid = (Vp // tn, M // tm)
        in_specs = [pl.BlockSpec((tm, Hp), lambda j, i: (i, 0)),
                    pl.BlockSpec((Hp, tn), lambda j, i: (0, j)),
                    pl.BlockSpec((1, tn), lambda j, i: (0, j))]
        out_spec = pl.BlockSpec((tm, tn), lambda j, i: (i, j))
    else:
        grid = (M // tm, Vp // tn)
        in_specs = [pl.BlockSpec((tm, Hp), lambda i, j: (i, 0)),
                    pl.BlockSpec((Hp, tn), lambda i, j: (0, j)),
                    pl.BlockSpec((1, tn), lambda i, j: (0, j))]
        out_spec = pl.BlockSpec((tm, tn), lambda i, j: (i, j))

    logits_p = pl.pallas_call(
        _decoder_kernel,
        out_shape=jax.ShapeDtypeStruct((M, Vp), jnp.float32),
        grid_spec=pltpu.PrefetchScalarGridSpec(
            num_scalar_prefetch=0, grid=grid,
            in_specs=in_specs, out_specs=out_spec),
        compiler_params=pltpu.CompilerParams(
            dimension_semantics=("parallel", "parallel"),
            vmem_limit_bytes=_vmem_limit(dec_est)),
    )(h2d, wdec_p, bdec_p)

    # Vocab de-pad only when needed (when V % 128 == 0 this is a no-op).
    # For large-V LMs prefer keeping the padded logits and masking downstream.
    decoded = logits_p if V == Vp else logits_p[:, :V]
    hidden = (h_fin[None, :, :H], c_fin[None, :, :H])          # (1, B, H) each
    return decoded, hidden


# ------------------------------- reference ------------------------------------
def lm_forward_reference(tokens, embed_w, wih, whh, b, wdec, bdec):
    """Pure-JAX reference (lax.scan LSTM, PyTorch gate order) for correctness."""
    B, T = tokens.shape
    H = whh.shape[0]
    x = jnp.take(embed_w, tokens, axis=0)            # (B, T, E)
    x_t = jnp.transpose(x, (1, 0, 2))                # (T, B, E)

    def step(carry, x_step):
        h, c = carry
        gates = x_step @ wih + h @ whh + b[0]
        i_g = jax.nn.sigmoid(gates[:, 0 * H:1 * H])
        f_g = jax.nn.sigmoid(gates[:, 1 * H:2 * H])
        g_g = jnp.tanh(gates[:, 2 * H:3 * H])
        o_g = jax.nn.sigmoid(gates[:, 3 * H:4 * H])
        c_new = f_g * c + i_g * g_g
        h_new = o_g * jnp.tanh(c_new)
        return (h_new, c_new), h_new

    h0 = jnp.zeros((B, H), jnp.float32)
    c0 = jnp.zeros((B, H), jnp.float32)
    (h_f, c_f), hs = jax.lax.scan(step, (h0, c0), x_t)
    out = jnp.transpose(hs, (1, 0, 2)).reshape(B * T, H)
    decoded = out @ wdec + bdec[0]
    return decoded, (h_f[None], c_f[None])


if __name__ == "__main__":
    # Small config: batch=2, seq=8, embed_dim=32, hid_dim=32, dict_len=64
    B, T, E, H, V = 2, 8, 32, 32, 64

    key = jax.random.PRNGKey(0)
    k_tok, k_emb, k_wih, k_whh, k_bih, k_bhh, k_dec = jax.random.split(key, 7)

    tokens = jax.random.randint(k_tok, (B, T), 0, V, dtype=jnp.int32)

    init_range = 0.1
    embed_w = jax.random.uniform(k_emb, (V, E), jnp.float32, -init_range, init_range)
    # LSTM params (stored pre-transposed for the kernel), PyTorch gate order i,f,g,o
    wih = jax.random.uniform(k_wih, (E, 4 * H), jnp.float32, -init_range, init_range)
    whh = jax.random.uniform(k_whh, (H, 4 * H), jnp.float32, -init_range, init_range)
    b = (jax.random.uniform(k_bih, (1, 4 * H), jnp.float32, -init_range, init_range)
         + jax.random.uniform(k_bhh, (1, 4 * H), jnp.float32, -init_range, init_range))
    # Decoder: weight uniform(-0.1, 0.1), bias zeros (as in init_weights)
    wdec = jax.random.uniform(k_dec, (H, V), jnp.float32, -init_range, init_range)
    bdec = jnp.zeros((1, V), jnp.float32)

    ref_dec, (ref_h, ref_c) = lm_forward_reference(
        tokens, embed_w, wih, whh, b, wdec, bdec)

    # f32 parameter path: matches the pure-JAX / PyTorch reference tightly.
    fwd32 = jax.jit(functools.partial(lm_forward, param_dtype=jnp.float32))
    dec32, (h32, c32) = fwd32(tokens, embed_w, wih, whh, b, wdec, bdec)
    jax.block_until_ready((dec32, h32, c32))
    np.testing.assert_allclose(np.asarray(dec32), np.asarray(ref_dec), rtol=1e-4, atol=1e-4)
    np.testing.assert_allclose(np.asarray(h32), np.asarray(ref_h), rtol=1e-4, atol=1e-4)
    np.testing.assert_allclose(np.asarray(c32), np.asarray(ref_c), rtol=1e-4, atol=1e-4)

    # Default bf16 matmul-operand path (f32 accumulation / element-wise math):
    # looser tolerance since rounding compounds over the T-step recurrence.
    fwd16 = jax.jit(lm_forward)
    dec16, (h16, c16) = fwd16(tokens, embed_w, wih, whh, b, wdec, bdec)
    jax.block_until_ready((dec16, h16, c16))
    np.testing.assert_allclose(np.asarray(dec16), np.asarray(ref_dec), rtol=5e-2, atol=1e-2)
    np.testing.assert_allclose(np.asarray(h16), np.asarray(ref_h), rtol=5e-2, atol=1e-2)
    np.testing.assert_allclose(np.asarray(c16), np.asarray(ref_c), rtol=5e-2, atol=1e-2)

    assert dec32.shape == (B * T, V)
    assert h32.shape == (1, B, H) and c32.shape == (1, B, H)
    print("KERNEL_OK")
</pallas_src>

<mosaic_0001>
module attributes {stable_mosaic.version = 11 : i64} {
  func.func @_lstm_kernel(%arg0: i32, %arg1: i32, %arg2: memref<2x8x32xf32, #tpu.memory_space<vmem>>, %arg3: memref<2x128xf32, #tpu.memory_space<vmem>>, %arg4: memref<2x128xf32, #tpu.memory_space<vmem>>, %arg5: memref<32x512xf32, #tpu.memory_space<vmem>>, %arg6: memref<128x512xf32, #tpu.memory_space<vmem>>, %arg7: memref<1x512xf32, #tpu.memory_space<vmem>>, %arg8: memref<2x8x128xf32, #tpu.memory_space<vmem>>, %arg9: memref<2x128xf32, #tpu.memory_space<vmem>>, %arg10: memref<2x128xf32, #tpu.memory_space<vmem>>, %arg11: memref<2x128xf32, #tpu.memory_space<vmem>>, %arg12: memref<2x128xf32, #tpu.memory_space<vmem>>) attributes {dimension_semantics = [#tpu.dimension_semantics<parallel>, #tpu.dimension_semantics<arbitrary>], iteration_bounds = array<i64: 1, 1>, scalar_prefetch = 0 : i64, scratch_operands = 2 : i64, tpu.core_type = #tpu.core_type<tc>, window_params = [{transform_indices = @transform_0, window_bounds = array<i64: 2, 8, 32>}, {transform_indices = @transform_1, window_bounds = array<i64: 2, 128>}, {transform_indices = @transform_2, window_bounds = array<i64: 2, 128>}, {pipeline_mode = #tpu.pipeline_mode<synchronous>, transform_indices = @transform_3, window_bounds = array<i64: 32, 512>}, {pipeline_mode = #tpu.pipeline_mode<synchronous>, transform_indices = @transform_4, window_bounds = array<i64: 128, 512>}, {pipeline_mode = #tpu.pipeline_mode<synchronous>, transform_indices = @transform_5, window_bounds = array<i64: 1, 512>}, {transform_indices = @transform_6, window_bounds = array<i64: 2, 8, 128>}, {transform_indices = @transform_7, window_bounds = array<i64: 2, 128>}, {transform_indices = @transform_8, window_bounds = array<i64: 2, 128>}]} {
    %c0_i32 = arith.constant 0 : i32
    %0 = arith.cmpi eq, %arg1, %c0_i32 : i32
    %1 = arith.extui %0 : i1 to i32
    %c0_i32_0 = arith.constant 0 : i32
    %2 = arith.cmpi ne, %1, %c0_i32_0 : i32
    scf.if %2 {
      %c0_52 = arith.constant 0 : index
      %c0_53 = arith.constant 0 : index
      %205 = vector.load %arg3[%c0_52, %c0_53] : memref<2x128xf32, #tpu.memory_space<vmem>>, vector<2x128xf32>
      %c0_54 = arith.constant 0 : index
      %c0_55 = arith.constant 0 : index
      %206 = vector.load %arg11[%c0_54, %c0_55] : memref<2x128xf32, #tpu.memory_space<vmem>>, vector<2x128xf32>
      tpu.vector_store %arg11[%c0_54, %c0_55], %205 {strides = array<i32>} : memref<2x128xf32, #tpu.memory_space<vmem>>, vector<2x128xf32>,
      %c0_56 = arith.constant 0 : index
      %c0_57 = arith.constant 0 : index
      %207 = vector.load %arg4[%c0_56, %c0_57] : memref<2x128xf32, #tpu.memory_space<vmem>>, vector<2x128xf32>
      %c0_58 = arith.constant 0 : index
      %c0_59 = arith.constant 0 : index
      %208 = vector.load %arg12[%c0_58, %c0_59] : memref<2x128xf32, #tpu.memory_space<vmem>>, vector<2x128xf32>
      tpu.vector_store %arg12[%c0_58, %c0_59], %207 {strides = array<i32>} : memref<2x128xf32, #tpu.memory_space<vmem>>, vector<2x128xf32>,
    } else {
    }
    %c0 = arith.constant 0 : index
    %c0_1 = arith.constant 0 : index
    %3 = vector.load %arg11[%c0, %c0_1] : memref<2x128xf32, #tpu.memory_space<vmem>>, vector<2x128xf32>
    %c0_2 = arith.constant 0 : index
    %c0_3 = arith.constant 0 : index
    %4 = vector.load %arg12[%c0_2, %c0_3] : memref<2x128xf32, #tpu.memory_space<vmem>>, vector<2x128xf32>
    %c0_4 = arith.constant 0 : index
    %c0_5 = arith.constant 0 : index
    %5 = vector.load %arg6[%c0_4, %c0_5] : memref<128x512xf32, #tpu.memory_space<vmem>>, vector<128x512xf32>
    %c0_6 = arith.constant 0 : index
    %c0_7 = arith.constant 0 : index
    %c0_8 = arith.constant 0 : index
    %6 = vector.load %arg2[%c0_6, %c0_7, %c0_8] : memref<2x8x32xf32, #tpu.memory_space<vmem>>, vector<2x8x32xf32>
    %7 = vector.shape_cast %6 : vector<2x8x32xf32> to vector<16x32xf32>
    %c0_9 = arith.constant 0 : index
    %c0_10 = arith.constant 0 : index
    %8 = vector.load %arg5[%c0_9, %c0_10] : memref<32x512xf32, #tpu.memory_space<vmem>>, vector<32x512xf32>
    %cst = arith.constant dense<0.000000e+00> : vector<16x512xf32>
    %9 = tpu.matmul %7, %8, %cst {dimension_numbers = #tpu.dot_dimension_numbers<[1], [0], [0], [1], [0, 0, 1, 1], [], []>} : vector<16x32xf32>, vector<32x512xf32>, vector<16x512xf32> -> vector<16x512xf32>
    %c0_11 = arith.constant 0 : index
    %c0_12 = arith.constant 0 : index
    %10 = vector.load %arg7[%c0_11, %c0_12] : memref<1x512xf32, #tpu.memory_space<vmem>>, vector<1x512xf32>
    %11 = vector.shape_cast %10 : vector<1x512xf32> to vector<512xf32>
    %12 = vector.shape_cast %11 : vector<512xf32> to vector<1x512xf32>
    %13 = vector.broadcast %12 : vector<1x512xf32> to vector<16x512xf32>
    %14 = arith.addf %9, %13 : vector<16x512xf32>
    %15 = vector.shape_cast %14 : vector<16x512xf32> to vector<2x8x512xf32>
    %16 = vector.extract_strided_slice %15 {offsets = [0, 0, 0], sizes = [2, 1, 512], strides = [1, 1, 1]} : vector<2x8x512xf32> to vector<2x1x512xf32>
    %17 = vector.shape_cast %16 : vector<2x1x512xf32> to vector<2x512xf32>
    %cst_13 = arith.constant dense<0.000000e+00> : vector<2x512xf32>
    %18 = tpu.matmul %3, %5, %cst_13 {dimension_numbers = #tpu.dot_dimension_numbers<[1], [0], [0], [1], [0, 0, 1, 1], [], []>} : vector<2x128xf32>, vector<128x512xf32>, vector<2x512xf32> -> vector<2x512xf32>
    %19 = arith.addf %17, %18 : vector<2x512xf32>
    %20 = vector.extract_strided_slice %19 {offsets = [0, 0], sizes = [2, 384], strides = [1, 1]} : vector<2x512xf32> to vector<2x384xf32>
    %21 = arith.negf %20 : vector<2x384xf32>
    %22 = math.exp %21 : vector<2x384xf32>
    %cst_14 = arith.constant 1.000000e+00 : f32
    %23 = vector.broadcast %cst_14 : f32 to vector<2x384xf32>
    %24 = arith.addf %23, %22 : vector<2x384xf32>
    %25 = arith.divf %23, %24 : vector<2x384xf32>
    %26 = vector.extract_strided_slice %25 {offsets = [0, 0], sizes = [2, 128], strides = [1, 1]} : vector<2x384xf32> to vector<2x128xf32>
    %27 = vector.extract_strided_slice %25 {offsets = [0, 128], sizes = [2, 128], strides = [1, 1]} : vector<2x384xf32> to vector<2x128xf32>
    %28 = vector.extract_strided_slice %25 {offsets = [0, 256], sizes = [2, 128], strides = [1, 1]} : vector<2x384xf32> to vector<2x128xf32>
    %29 = vector.extract_strided_slice %19 {offsets = [0, 384], sizes = [2, 128], strides = [1, 1]} : vector<2x512xf32> to vector<2x128xf32>
    %30 = math.tanh %29 : vector<2x128xf32>
    %31 = arith.mulf %27, %4 : vector<2x128xf32>
    %32 = arith.mulf %26, %30 : vector<2x128xf32>
    %33 = arith.addf %31, %32 : vector<2x128xf32>
    %34 = math.tanh %33 : vector<2x128xf32>
    %35 = arith.mulf %28, %34 : vector<2x128xf32>
    %c0_15 = arith.constant 0 : index
    %c0_16 = arith.constant 0 : index
    %c0_17 = arith.constant 0 : index
    %36 = vector.load %arg8[%c0_15, %c0_16, %c0_17] : memref<2x8x128xf32, #tpu.memory_space<vmem>>, vector<2x1x128xf32>
    %37 = vector.shape_cast %36 : vector<2x1x128xf32> to vector<2x128xf32>
    %38 = vector.shape_cast %35 : vector<2x128xf32> to vector<2x1x128xf32>
    tpu.vector_store %arg8[%c0_15, %c0_16, %c0_17], %38 {strides = array<i32>} : memref<2x8x128xf32, #tpu.memory_space<vmem>>, vector<2x1x128xf32>,
    %39 = vector.extract_strided_slice %15 {offsets = [0, 1, 0], sizes = [2, 1, 512], strides = [1, 1, 1]} : vector<2x8x512xf32> to vector<2x1x512xf32>
    %40 = vector.shape_cast %39 : vector<2x1x512xf32> to vector<2x512xf32>
    %cst_18 = arith.constant dense<0.000000e+00> : vector<2x512xf32>
    %41 = tpu.matmul %35, %5, %cst_18 {dimension_numbers = #tpu.dot_dimension_numbers<[1], [0], [0], [1], [0, 0, 1, 1], [], []>} : vector<2x128xf32>, vector<128x512xf32>, vector<2x512xf32> -> vector<2x512xf32>
    %42 = arith.addf %40, %41 : vector<2x512xf32>
    %43 = vector.extract_strided_slice %42 {offsets = [0, 0], sizes = [2, 384], strides = [1, 1]} : vector<2x512xf32> to vector<2x384xf32>
    %44 = arith.negf %43 : vector<2x384xf32>
    %45 = math.exp %44 : vector<2x384xf32>
    %cst_19 = arith.constant 1.000000e+00 : f32
    %46 = vector.broadcast %cst_19 : f32 to vector<2x384xf32>
    %47 = arith.addf %46, %45 : vector<2x384xf32>
    %48 = arith.divf %46, %47 : vector<2x384xf32>
    %49 = vector.extract_strided_slice %48 {offsets = [0, 0], sizes = [2, 128], strides = [1, 1]} : vector<2x384xf32> to vector<2x128xf32>
    %50 = vector.extract_strided_slice %48 {offsets = [0, 128], sizes = [2, 128], strides = [1, 1]} : vector<2x384xf32> to vector<2x128xf32>
    %51 = vector.extract_strided_slice %48 {offsets = [0, 256], sizes = [2, 128], strides = [1, 1]} : vector<2x384xf32> to vector<2x128xf32>
    %52 = vector.extract_strided_slice %42 {offsets = [0, 384], sizes = [2, 128], strides = [1, 1]} : vector<2x512xf32> to vector<2x128xf32>
    %53 = math.tanh %52 : vector<2x128xf32>
    %54 = arith.mulf %50, %33 : vector<2x128xf32>
    %55 = arith.mulf %49, %53 : vector<2x128xf32>
    %56 = arith.addf %54, %55 : vector<2x128xf32>
    %57 = math.tanh %56 : vector<2x128xf32>
    %58 = arith.mulf %51, %57 : vector<2x128xf32>
    %c0_20 = arith.constant 0 : index
    %c1 = arith.constant 1 : index
    %c0_21 = arith.constant 0 : index
    %59 = vector.load %arg8[%c0_20, %c1, %c0_21] : memref<2x8x128xf32, #tpu.memory_space<vmem>>, vector<2x1x128xf32>
    %60 = vector.shape_cast %59 : vector<2x1x128xf32> to vector<2x128xf32>
    %61 = vector.shape_cast %58 : vector<2x128xf32> to vector<2x1x128xf32>
    tpu.vector_store %arg8[%c0_20, %c1, %c0_21], %61 {strides = array<i32>} : memref<2x8x128xf32, #tpu.memory_space<vmem>>, vector<2x1x128xf32>,
    %62 = vector.extract_strided_slice %15 {offsets = [0, 2, 0], sizes = [2, 1, 512], strides = [1, 1, 1]} : vector<2x8x512xf32> to vector<2x1x512xf32>
    %63 = vector.shape_cast %62 : vector<2x1x512xf32> to vector<2x512xf32>
    %cst_22 = arith.constant dense<0.000000e+00> : vector<2x512xf32>
    %64 = tpu.matmul %58, %5, %cst_22 {dimension_numbers = #tpu.dot_dimension_numbers<[1], [0], [0], [1], [0, 0, 1, 1], [], []>} : vector<2x128xf32>, vector<128x512xf32>, vector<2x512xf32> -> vector<2x512xf32>
    %65 = arith.addf %63, %64 : vector<2x512xf32>
    %66 = vector.extract_strided_slice %65 {offsets = [0, 0], sizes = [2, 384], strides = [1, 1]} : vector<2x512xf32> to vector<2x384xf32>
    %67 = arith.negf %66 : vector<2x384xf32>
    %68 = math.exp %67 : vector<2x384xf32>
    %cst_23 = arith.constant 1.000000e+00 : f32
    %69 = vector.broadcast %cst_23 : f32 to vector<2x384xf32>
    %70 = arith.addf %69, %68 : vector<2x384xf32>
    %71 = arith.divf %69, %70 : vector<2x384xf32>
    %72 = vector.extract_strided_slice %71 {offsets = [0, 0], sizes = [2, 128], strides = [1, 1]} : vector<2x384xf32> to vector<2x128xf32>
    %73 = vector.extract_strided_slice %71 {offsets = [0, 128], sizes = [2, 128], strides = [1, 1]} : vector<2x384xf32> to vector<2x128xf32>
    %74 = vector.extract_strided_slice %71 {offsets = [0, 256], sizes = [2, 128], strides = [1, 1]} : vector<2x384xf32> to vector<2x128xf32>
    %75 = vector.extract_strided_slice %65 {offsets = [0, 384], sizes = [2, 128], strides = [1, 1]} : vector<2x512xf32> to vector<2x128xf32>
    %76 = math.tanh %75 : vector<2x128xf32>
    %77 = arith.mulf %73, %56 : vector<2x128xf32>
    %78 = arith.mulf %72, %76 : vector<2x128xf32>
    %79 = arith.addf %77, %78 : vector<2x128xf32>
    %80 = math.tanh %79 : vector<2x128xf32>
    %81 = arith.mulf %74, %80 : vector<2x128xf32>
    %c0_24 = arith.constant 0 : index
    %c2 = arith.constant 2 : index
    %c0_25 = arith.constant 0 : index
    %82 = vector.load %arg8[%c0_24, %c2, %c0_25] : memref<2x8x128xf32, #tpu.memory_space<vmem>>, vector<2x1x128xf32>
    %83 = vector.shape_cast %82 : vector<2x1x128xf32> to vector<2x128xf32>
    %84 = vector.shape_cast %81 : vector<2x128xf32> to vector<2x1x128xf32>
    tpu.vector_store %arg8[%c0_24, %c2, %c0_25], %84 {strides = array<i32>} : memref<2x8x128xf32, #tpu.memory_space<vmem>>, vector<2x1x128xf32>,
    %85 = vector.extract_strided_slice %15 {offsets = [0, 3, 0], sizes = [2, 1, 512], strides = [1, 1, 1]} : vector<2x8x512xf32> to vector<2x1x512xf32>
    %86 = vector.shape_cast %85 : vector<2x1x512xf32> to vector<2x512xf32>
    %cst_26 = arith.constant dense<0.000000e+00> : vector<2x512xf32>
    %87 = tpu.matmul %81, %5, %cst_26 {dimension_numbers = #tpu.dot_dimension_numbers<[1], [0], [0], [1], [0, 0, 1, 1], [], []>} : vector<2x128xf32>, vector<128x512xf32>, vector<2x512xf32> -> vector<2x512xf32>
    %88 = arith.addf %86, %87 : vector<2x512xf32>
    %89 = vector.extract_strided_slice %88 {offsets = [0, 0], sizes = [2, 384], strides = [1, 1]} : vector<2x512xf32> to vector<2x384xf32>
    %90 = arith.negf %89 : vector<2x384xf32>
    %91 = math.exp %90 : vector<2x384xf32>
    %cst_27 = arith.constant 1.000000e+00 : f32
    %92 = vector.broadcast %cst_27 : f32 to vector<2x384xf32>
    %93 = arith.addf %92, %91 : vector<2x384xf32>
    %94 = arith.divf %92, %93 : vector<2x384xf32>
    %95 = vector.extract_strided_slice %94 {offsets = [0, 0], sizes = [2, 128], strides = [1, 1]} : vector<2x384xf32> to vector<2x128xf32>
    %96 = vector.extract_strided_slice %94 {offsets = [0, 128], sizes = [2, 128], strides = [1, 1]} : vector<2x384xf32> to vector<2x128xf32>
    %97 = vector.extract_strided_slice %94 {offsets = [0, 256], sizes = [2, 128], strides = [1, 1]} : vector<2x384xf32> to vector<2x128xf32>
    %98 = vector.extract_strided_slice %88 {offsets = [0, 384], sizes = [2, 128], strides = [1, 1]} : vector<2x512xf32> to vector<2x128xf32>
    %99 = math.tanh %98 : vector<2x128xf32>
    %100 = arith.mulf %96, %79 : vector<2x128xf32>
    %101 = arith.mulf %95, %99 : vector<2x128xf32>
    %102 = arith.addf %100, %101 : vector<2x128xf32>
    %103 = math.tanh %102 : vector<2x128xf32>
    %104 = arith.mulf %97, %103 : vector<2x128xf32>
    %c0_28 = arith.constant 0 : index
    %c3 = arith.constant 3 : index
    %c0_29 = arith.constant 0 : index
    %105 = vector.load %arg8[%c0_28, %c3, %c0_29] : memref<2x8x128xf32, #tpu.memory_space<vmem>>, vector<2x1x128xf32>
    %106 = vector.shape_cast %105 : vector<2x1x128xf32> to vector<2x128xf32>
    %107 = vector.shape_cast %104 : vector<2x128xf32> to vector<2x1x128xf32>
    tpu.vector_store %arg8[%c0_28, %c3, %c0_29], %107 {strides = array<i32>} : memref<2x8x128xf32, #tpu.memory_space<vmem>>, vector<2x1x128xf32>,
    %108 = vector.extract_strided_slice %15 {offsets = [0, 4, 0], sizes = [2, 1, 512], strides = [1, 1, 1]} : vector<2x8x512xf32> to vector<2x1x512xf32>
    %109 = vector.shape_cast %108 : vector<2x1x512xf32> to vector<2x512xf32>
    %cst_30 = arith.constant dense<0.000000e+00> : vector<2x512xf32>
    %110 = tpu.matmul %104, %5, %cst_30 {dimension_numbers = #tpu.dot_dimension_numbers<[1], [0], [0], [1], [0, 0, 1, 1], [], []>} : vector<2x128xf32>, vector<128x512xf32>, vector<2x512xf32> -> vector<2x512xf32>
    %111 = arith.addf %109, %110 : vector<2x512xf32>
    %112 = vector.extract_strided_slice %111 {offsets = [0, 0], sizes = [2, 384], strides = [1, 1]} : vector<2x512xf32> to vector<2x384xf32>
    %113 = arith.negf %112 : vector<2x384xf32>
    %114 = math.exp %113 : vector<2x384xf32>
    %cst_31 = arith.constant 1.000000e+00 : f32
    %115 = vector.broadcast %cst_31 : f32 to vector<2x384xf32>
    %116 = arith.addf %115, %114 : vector<2x384xf32>
    %117 = arith.divf %115, %116 : vector<2x384xf32>
    %118 = vector.extract_strided_slice %117 {offsets = [0, 0], sizes = [2, 128], strides = [1, 1]} : vector<2x384xf32> to vector<2x128xf32>
    %119 = vector.extract_strided_slice %117 {offsets = [0, 128], sizes = [2, 128], strides = [1, 1]} : vector<2x384xf32> to vector<2x128xf32>
    %120 = vector.extract_strided_slice %117 {offsets = [0, 256], sizes = [2, 128], strides = [1, 1]} : vector<2x384xf32> to vector<2x128xf32>
    %121 = vector.extract_strided_slice %111 {offsets = [0, 384], sizes = [2, 128], strides = [1, 1]} : vector<2x512xf32> to vector<2x128xf32>
    %122 = math.tanh %121 : vector<2x128xf32>
    %123 = arith.mulf %119, %102 : vector<2x128xf32>
    %124 = arith.mulf %118, %122 : vector<2x128xf32>
    %125 = arith.addf %123, %124 : vector<2x128xf32>
    %126 = math.tanh %125 : vector<2x128xf32>
    %127 = arith.mulf %120, %126 : vector<2x128xf32>
    %c0_32 = arith.constant 0 : index
    %c4 = arith.constant 4 : index
    %c0_33 = arith.constant 0 : index
    %128 = vector.load %arg8[%c0_32, %c4, %c0_33] : memref<2x8x128xf32, #tpu.memory_space<vmem>>, vector<2x1x128xf32>
    %129 = vector.shape_cast %128 : vector<2x1x128xf32> to vector<2x128xf32>
    %130 = vector.shape_cast %127 : vector<2x128xf32> to vector<2x1x128xf32>
    tpu.vector_store %arg8[%c0_32, %c4, %c0_33], %130 {strides = array<i32>} : memref<2x8x128xf32, #tpu.memory_space<vmem>>, vector<2x1x128xf32>,
    %131 = vector.extract_strided_slice %15 {offsets = [0, 5, 0], sizes = [2, 1, 512], strides = [1, 1, 1]} : vector<2x8x512xf32> to vector<2x1x512xf32>
    %132 = vector.shape_cast %131 : vector<2x1x512xf32> to vector<2x512xf32>
    %cst_34 = arith.constant dense<0.000000e+00> : vector<2x512xf32>
    %133 = tpu.matmul %127, %5, %cst_34 {dimension_numbers = #tpu.dot_dimension_numbers<[1], [0], [0], [1], [0, 0, 1, 1], [], []>} : vector<2x128xf32>, vector<128x512xf32>, vector<2x512xf32> -> vector<2x512xf32>
    %134 = arith.addf %132, %133 : vector<2x512xf32>
    %135 = vector.extract_strided_slice %134 {offsets = [0, 0], sizes = [2, 384], strides = [1, 1]} : vector<2x512xf32> to vector<2x384xf32>
    %136 = arith.negf %135 : vector<2x384xf32>
    %137 = math.exp %136 : vector<2x384xf32>
    %cst_35 = arith.constant 1.000000e+00 : f32
    %138 = vector.broadcast %cst_35 : f32 to vector<2x384xf32>
    %139 = arith.addf %138, %137 : vector<2x384xf32>
    %140 = arith.divf %138, %139 : vector<2x384xf32>
    %141 = vector.extract_strided_slice %140 {offsets = [0, 0], sizes = [2, 128], strides = [1, 1]} : vector<2x384xf32> to vector<2x128xf32>
    %142 = vector.extract_strided_slice %140 {offsets = [0, 128], sizes = [2, 128], strides = [1, 1]} : vector<2x384xf32> to vector<2x128xf32>
    %143 = vector.extract_strided_slice %140 {offsets = [0, 256], sizes = [2, 128], strides = [1, 1]} : vector<2x384xf32> to vector<2x128xf32>
    %144 = vector.extract_strided_slice %134 {offsets = [0, 384], sizes = [2, 128], strides = [1, 1]} : vector<2x512xf32> to vector<2x128xf32>
    %145 = math.tanh %144 : vector<2x128xf32>
    %146 = arith.mulf %142, %125 : vector<2x128xf32>
    %147 = arith.mulf %141, %145 : vector<2x128xf32>
    %148 = arith.addf %146, %147 : vector<2x128xf32>
    %149 = math.tanh %148 : vector<2x128xf32>
    %150 = arith.mulf %143, %149 : vector<2x128xf32>
    %c0_36 = arith.constant 0 : index
    %c5 = arith.constant 5 : index
    %c0_37 = arith.constant 0 : index
    %151 = vector.load %arg8[%c0_36, %c5, %c0_37] : memref<2x8x128xf32, #tpu.memory_space<vmem>>, vector<2x1x128xf32>
    %152 = vector.shape_cast %151 : vector<2x1x128xf32> to vector<2x128xf32>
    %153 = vector.shape_cast %150 : vector<2x128xf32> to vector<2x1x128xf32>
    tpu.vector_store %arg8[%c0_36, %c5, %c0_37], %153 {strides = array<i32>} : memref<2x8x128xf32, #tpu.memory_space<vmem>>, vector<2x1x128xf32>,
    %154 = vector.extract_strided_slice %15 {offsets = [0, 6, 0], sizes = [2, 1, 512], strides = [1, 1, 1]} : vector<2x8x512xf32> to vector<2x1x512xf32>
    %155 = vector.shape_cast %154 : vector<2x1x512xf32> to vector<2x512xf32>
    %cst_38 = arith.constant dense<0.000000e+00> : vector<2x512xf32>
    %156 = tpu.matmul %150, %5, %cst_38 {dimension_numbers = #tpu.dot_dimension_numbers<[1], [0], [0], [1], [0, 0, 1, 1], [], []>} : vector<2x128xf32>, vector<128x512xf32>, vector<2x512xf32> -> vector<2x512xf32>
    %157 = arith.addf %155, %156 : vector<2x512xf32>
    %158 = vector.extract_strided_slice %157 {offsets = [0, 0], sizes = [2, 384], strides = [1, 1]} : vector<2x512xf32> to vector<2x384xf32>
    %159 = arith.negf %158 : vector<2x384xf32>
    %160 = math.exp %159 : vector<2x384xf32>
    %cst_39 = arith.constant 1.000000e+00 : f32
    %161 = vector.broadcast %cst_39 : f32 to vector<2x384xf32>
    %162 = arith.addf %161, %160 : vector<2x384xf32>
    %163 = arith.divf %161, %162 : vector<2x384xf32>
    %164 = vector.extract_strided_slice %163 {offsets = [0, 0], sizes = [2, 128], strides = [1, 1]} : vector<2x384xf32> to vector<2x128xf32>
    %165 = vector.extract_strided_slice %163 {offsets = [0, 128], sizes = [2, 128], strides = [1, 1]} : vector<2x384xf32> to vector<2x128xf32>
    %166 = vector.extract_strided_slice %163 {offsets = [0, 256], sizes = [2, 128], strides = [1, 1]} : vector<2x384xf32> to vector<2x128xf32>
    %167 = vector.extract_strided_slice %157 {offsets = [0, 384], sizes = [2, 128], strides = [1, 1]} : vector<2x512xf32> to vector<2x128xf32>
    %168 = math.tanh %167 : vector<2x128xf32>
    %169 = arith.mulf %165, %148 : vector<2x128xf32>
    %170 = arith.mulf %164, %168 : vector<2x128xf32>
    %171 = arith.addf %169, %170 : vector<2x128xf32>
    %172 = math.tanh %171 : vector<2x128xf32>
    %173 = arith.mulf %166, %172 : vector<2x128xf32>
    %c0_40 = arith.constant 0 : index
    %c6 = arith.constant 6 : index
    %c0_41 = arith.constant 0 : index
    %174 = vector.load %arg8[%c0_40, %c6, %c0_41] : memref<2x8x128xf32, #tpu.memory_space<vmem>>, vector<2x1x128xf32>
    %175 = vector.shape_cast %174 : vector<2x1x128xf32> to vector<2x128xf32>
    %176 = vector.shape_cast %173 : vector<2x128xf32> to vector<2x1x128xf32>
    tpu.vector_store %arg8[%c0_40, %c6, %c0_41], %176 {strides = array<i32>} : memref<2x8x128xf32, #tpu.memory_space<vmem>>, vector<2x1x128xf32>,
    %177 = vector.extract_strided_slice %15 {offsets = [0, 7, 0], sizes = [2, 1, 512], strides = [1, 1, 1]} : vector<2x8x512xf32> to vector<2x1x512xf32>
    %178 = vector.shape_cast %177 : vector<2x1x512xf32> to vector<2x512xf32>
    %cst_42 = arith.constant dense<0.000000e+00> : vector<2x512xf32>
    %179 = tpu.matmul %173, %5, %cst_42 {dimension_numbers = #tpu.dot_dimension_numbers<[1], [0], [0], [1], [0, 0, 1, 1], [], []>} : vector<2x128xf32>, vector<128x512xf32>, vector<2x512xf32> -> vector<2x512xf32>
    %180 = arith.addf %178, %179 : vector<2x512xf32>
    %181 = vector.extract_strided_slice %180 {offsets = [0, 0], sizes = [2, 384], strides = [1, 1]} : vector<2x512xf32> to vector<2x384xf32>
    %182 = arith.negf %181 : vector<2x384xf32>
    %183 = math.exp %182 : vector<2x384xf32>
    %cst_43 = arith.constant 1.000000e+00 : f32
    %184 = vector.broadcast %cst_43 : f32 to vector<2x384xf32>
    %185 = arith.addf %184, %183 : vector<2x384xf32>
    %186 = arith.divf %184, %185 : vector<2x384xf32>
    %187 = vector.extract_strided_slice %186 {offsets = [0, 0], sizes = [2, 128], strides = [1, 1]} : vector<2x384xf32> to vector<2x128xf32>
    %188 = vector.extract_strided_slice %186 {offsets = [0, 128], sizes = [2, 128], strides = [1, 1]} : vector<2x384xf32> to vector<2x128xf32>
    %189 = vector.extract_strided_slice %186 {offsets = [0, 256], sizes = [2, 128], strides = [1, 1]} : vector<2x384xf32> to vector<2x128xf32>
    %190 = vector.extract_strided_slice %180 {offsets = [0, 384], sizes = [2, 128], strides = [1, 1]} : vector<2x512xf32> to vector<2x128xf32>
    %191 = math.tanh %190 : vector<2x128xf32>
    %192 = arith.mulf %188, %171 : vector<2x128xf32>
    %193 = arith.mulf %187, %191 : vector<2x128xf32>
    %194 = arith.addf %192, %193 : vector<2x128xf32>
    %195 = math.tanh %194 : vector<2x128xf32>
    %196 = arith.mulf %189, %195 : vector<2x128xf32>
    %c0_44 = arith.constant 0 : index
    %c7 = arith.constant 7 : index
    %c0_45 = arith.constant 0 : index
    %197 = vector.load %arg8[%c0_44, %c7, %c0_45] : memref<2x8x128xf32, #tpu.memory_space<vmem>>, vector<2x1x128xf32>
    %198 = vector.shape_cast %197 : vector<2x1x128xf32> to vector<2x128xf32>
    %199 = vector.shape_cast %196 : vector<2x128xf32> to vector<2x1x128xf32>
    tpu.vector_store %arg8[%c0_44, %c7, %c0_45], %199 {strides = array<i32>} : memref<2x8x128xf32, #tpu.memory_space<vmem>>, vector<2x1x128xf32>,
    %c0_46 = arith.constant 0 : index
    %c0_47 = arith.constant 0 : index
    %200 = vector.load %arg11[%c0_46, %c0_47] : memref<2x128xf32, #tpu.memory_space<vmem>>, vector<2x128xf32>
    tpu.vector_store %arg11[%c0_46, %c0_47], %196 {strides = array<i32>} : memref<2x128xf32, #tpu.memory_space<vmem>>, vector<2x128xf32>,
    %c0_48 = arith.constant 0 : index
    %c0_49 = arith.constant 0 : index
    %201 = vector.load %arg12[%c0_48, %c0_49] : memref<2x128xf32, #tpu.memory_space<vmem>>, vector<2x128xf32>
    tpu.vector_store %arg12[%c0_48, %c0_49], %194 {strides = array<i32>} : memref<2x128xf32, #tpu.memory_space<vmem>>, vector<2x128xf32>,
    %c0_i32_50 = arith.constant 0 : i32
    %202 = arith.cmpi eq, %arg1, %c0_i32_50 : i32
    %203 = arith.extui %202 : i1 to i32
    %c0_i32_51 = arith.constant 0 : i32
    %204 = arith.cmpi ne, %203, %c0_i32_51 : i32
    scf.if %204 {
      %c0_52 = arith.constant 0 : index
      %c0_53 = arith.constant 0 : index
      %205 = vector.load %arg9[%c0_52, %c0_53] : memref<2x128xf32, #tpu.memory_space<vmem>>, vector<2x128xf32>
      tpu.vector_store %arg9[%c0_52, %c0_53], %196 {strides = array<i32>} : memref<2x128xf32, #tpu.memory_space<vmem>>, vector<2x128xf32>,
      %c0_54 = arith.constant 0 : index
      %c0_55 = arith.constant 0 : index
      %206 = vector.load %arg10[%c0_54, %c0_55] : memref<2x128xf32, #tpu.memory_space<vmem>>, vector<2x128xf32>
      tpu.vector_store %arg10[%c0_54, %c0_55], %194 {strides = array<i32>} : memref<2x128xf32, #tpu.memory_space<vmem>>, vector<2x128xf32>,
    } else {
    }
    return
  }
  func.func @transform_0(%arg0: i32, %arg1: i32) -> (i32, i32, i32) {
    %c0_i32 = arith.constant 0 : i32
    %c0_i32_0 = arith.constant 0 : i32
    return %arg0, %arg1, %c0_i32 : i32, i32, i32
  }
  func.func @transform_1(%arg0: i32, %arg1: i32) -> (i32, i32) {
    %c0_i32 = arith.constant 0 : i32
    %c0_i32_0 = arith.constant 0 : i32
    return %arg0, %c0_i32 : i32, i32
  }
  func.func @transform_2(%arg0: i32, %arg1: i32) -> (i32, i32) {
    %c0_i32 = arith.constant 0 : i32
    %c0_i32_0 = arith.constant 0 : i32
    return %arg0, %c0_i32 : i32, i32
  }
  func.func @transform_3(%arg0: i32, %arg1: i32) -> (i32, i32) {
    %c0_i32 = arith.constant 0 : i32
    %c0_i32_0 = arith.constant 0 : i32
    %c0_i32_1 = arith.constant 0 : i32
    return %c0_i32, %c0_i32_0 : i32, i32
  }
  func.func @transform_4(%arg0: i32, %arg1: i32) -> (i32, i32) {
    %c0_i32 = arith.constant 0 : i32
    %c0_i32_0 = arith.constant 0 : i32
    %c0_i32_1 = arith.constant 0 : i32
    return %c0_i32, %c0_i32_0 : i32, i32
  }
  func.func @transform_5(%arg0: i32, %arg1: i32) -> (i32, i32) {
    %c0_i32 = arith.constant 0 : i32
    %c0_i32_0 = arith.constant 0 : i32
    %c0_i32_1 = arith.constant 0 : i32
    return %c0_i32, %c0_i32_0 : i32, i32
  }
  func.func @transform_6(%arg0: i32, %arg1: i32) -> (i32, i32, i32) {
    %c0_i32 = arith.constant 0 : i32
    %c0_i32_0 = arith.constant 0 : i32
    return %arg0, %arg1, %c0_i32 : i32, i32, i32
  }
  func.func @transform_7(%arg0: i32, %arg1: i32) -> (i32, i32) {
    %c0_i32 = arith.constant 0 : i32
    %c0_i32_0 = arith.constant 0 : i32
    return %arg0, %c0_i32 : i32, i32
  }
  func.func @transform_8(%arg0: i32, %arg1: i32) -> (i32, i32) {
    %c0_i32 = arith.constant 0 : i32
    %c0_i32_0 = arith.constant 0 : i32
    return %arg0, %c0_i32 : i32, i32
  }
}

module attributes {stable_mosaic.version = 11 : i64} {
  func.func @_decoder_kernel(%arg0: i32, %arg1: i32, %arg2: memref<16x128xf32, #tpu.memory_space<vmem>>, %arg3: memref<128x128xf32, #tpu.memory_space<vmem>>, %arg4: memref<1x128xf32, #tpu.memory_space<vmem>>, %arg5: memref<16x128xf32, #tpu.memory_space<vmem>>) attributes {dimension_semantics = [#tpu.dimension_semantics<parallel>, #tpu.dimension_semantics<parallel>], iteration_bounds = array<i64: 1, 1>, scalar_prefetch = 0 : i64, scratch_operands = 0 : i64, tpu.core_type = #tpu.core_type<tc>, window_params = [{transform_indices = @transform_0, window_bounds = array<i64: 16, 128>}, {transform_indices = @transform_1, window_bounds = array<i64: 128, 128>}, {transform_indices = @transform_2, window_bounds = array<i64: 1, 128>}, {transform_indices = @transform_3, window_bounds = array<i64: 16, 128>}]} {
    %c0 = arith.constant 0 : index
    %c0_0 = arith.constant 0 : index
    %0 = vector.load %arg2[%c0, %c0_0] : memref<16x128xf32, #tpu.memory_space<vmem>>, vector<16x128xf32>
    %c0_1 = arith.constant 0 : index
    %c0_2 = arith.constant 0 : index
    %1 = vector.load %arg3[%c0_1, %c0_2] : memref<128x128xf32, #tpu.memory_space<vmem>>, vector<128x128xf32>
    %cst = arith.constant dense<0.000000e+00> : vector<16x128xf32>
    %2 = tpu.matmul %0, %1, %cst {dimension_numbers = #tpu.dot_dimension_numbers<[1], [0], [0], [1], [0, 0, 1, 1], [], []>} : vector<16x128xf32>, vector<128x128xf32>, vector<16x128xf32> -> vector<16x128xf32>
    %c0_3 = arith.constant 0 : index
    %c0_4 = arith.constant 0 : index
    %3 = vector.load %arg4[%c0_3, %c0_4] : memref<1x128xf32, #tpu.memory_space<vmem>>, vector<1x128xf32>
    %4 = vector.shape_cast %3 : vector<1x128xf32> to vector<128xf32>
    %5 = vector.shape_cast %4 : vector<128xf32> to vector<1x128xf32>
    %6 = vector.broadcast %5 : vector<1x128xf32> to vector<16x128xf32>
    %7 = arith.addf %2, %6 : vector<16x128xf32>
    %c0_5 = arith.constant 0 : index
    %c0_6 = arith.constant 0 : index
    %8 = vector.load %arg5[%c0_5, %c0_6] : memref<16x128xf32, #tpu.memory_space<vmem>>, vector<16x128xf32>
    tpu.vector_store %arg5[%c0_5, %c0_6], %7 {strides = array<i32>} : memref<16x128xf32, #tpu.memory_space<vmem>>, vector<16x128xf32>,
    return
  }
  func.func @transform_0(%arg0: i32, %arg1: i32) -> (i32, i32) {
    %c0_i32 = arith.constant 0 : i32
    %c0_i32_0 = arith.constant 0 : i32
    return %arg1, %c0_i32 : i32, i32
  }
  func.func @transform_1(%arg0: i32, %arg1: i32) -> (i32, i32) {
    %c0_i32 = arith.constant 0 : i32
    %c0_i32_0 = arith.constant 0 : i32
    return %c0_i32, %arg0 : i32, i32
  }
  func.func @transform_2(%arg0: i32, %arg1: i32) -> (i32, i32) {
    %c0_i32 = arith.constant 0 : i32
    %c0_i32_0 = arith.constant 0 : i32
    return %c0_i32, %arg0 : i32, i32
  }
  func.func @transform_3(%arg0: i32, %arg1: i32) -> (i32, i32) {
    %c0_i32 = arith.constant 0 : i32
    return %arg1, %arg0 : i32, i32
  }
}

</mosaic_0001>

<llo_original>
// kernel: lm_forward.3
$region0: #{lm_forward.3}
  #allocation0 [shape = 'u32[]', space=smem, size = 0x4, offset = 0x4, fixed_abs, tag = 'smem constant byte address 0x4 - core index']
  #allocation1 [shape = 'u32[72,128]{1,0:T(1,128)}', space=vmem, size = 0x9000, scoped, tag = 'internal scratch']
  %s0 = inlined_call_operand.vmem [shape: f32[16,128], index: 0, kind: input, shape index: {}]
  %s1 = inlined_call_operand.vmem [shape: f32[128,128], index: 1, kind: input, shape index: {}]
  %s2 = inlined_call_operand.vmem [shape: f32[1,128], index: 2, kind: input, shape index: {}]
  %s3 = inlined_call_operand.hbm [shape: f32[16,128], index: 3, kind: output, shape index: {}]
  %s4 = sld [smem:[#allocation0]]
  $region22: #{lm_forward.3} parent=0
    _
  %s6 = ssub.s32 1, %s4
  %s7 = scalar_select 0, %s6, %s4
  $region1: #{lm_forward.3} parent=0
    #allocation2 [shape = 'u8[8192]{0}', space=vmem, size = 0x2000, scoped, tag = 'output window, operand 0, single buffered']
    #allocation3 [shape = 's32[1]{0}', space=sflag, size = 0x4, scoped, tag = 'scoped memory for lm_forward.3']
    %8 = vsyncpa [#allocation3], 0
    // Predicated region
    $region2: #{lm_forward.3} parent=1 // pred_check
      _
    $region3: #{lm_forward.3} parent=1 // pred_check_branch
      %10 = sbr.rel (0) target = $region5
    $region4: #{lm_forward.3} parent=1 // pred_region
      _
    $region5: #{lm_forward.3} parent=1 // pred_fallthru
      _
    // Predicated region
    $region6: #{lm_forward.3} parent=1 // pred_check
      _
    $region7: #{lm_forward.3} parent=1 // pred_check_branch
      %12 = sbr.rel (0) target = $region9
    $region8: #{lm_forward.3} parent=1 // pred_region
      _
    $region9: #{lm_forward.3} parent=1 // pred_fallthru
      _
    // Predicated region
    $region10: #{lm_forward.3} parent=1 // pred_check
      _
    $region11: #{lm_forward.3} parent=1 // pred_check_branch
      %14 = sbr.rel (0) target = $region13
    $region12: #{lm_forward.3} parent=1 // pred_region
      _
    $region13: #{lm_forward.3} parent=1 // pred_fallthru
      _
    %v15 = vld [vmem:[%s0] sm:$0xff]
    %v16 = vld [vmem:[%s0 + $0x8] sm:$0xff]
    %v17 = vld [vmem:[%s1] sm:$0xff]
    %v18 = vld [vmem:[%s1 + $0x8] sm:$0xff]
    %v19 = vld [vmem:[%s1 + $0x10] sm:$0xff]
    %v20 = vld [vmem:[%s1 + $0x18] sm:$0xff]
    %v21 = vld [vmem:[%s1 + $0x20] sm:$0xff]
    %v22 = vld [vmem:[%s1 + $0x28] sm:$0xff]
    %v23 = vld [vmem:[%s1 + $0x30] sm:$0xff]
    %v24 = vld [vmem:[%s1 + $0x38] sm:$0xff]
    %v25 = vld [vmem:[%s1 + $0x40] sm:$0xff]
    %v26 = vld [vmem:[%s1 + $0x48] sm:$0xff]
    %v27 = vld [vmem:[%s1 + $0x50] sm:$0xff]
    %v28 = vld [vmem:[%s1 + $0x58] sm:$0xff]
    %v29 = vld [vmem:[%s1 + $0x60] sm:$0xff]
    %v30 = vld [vmem:[%s1 + $0x68] sm:$0xff]
    %v31 = vld [vmem:[%s1 + $0x70] sm:$0xff]
    %v32 = vld [vmem:[%s1 + $0x78] sm:$0xff]
    %v33 = vld [vmem:[%s2] sm:$0x1]
    %v35 = vperm.slane %v33, 0
    %37 = vmatpush.msra.mxu0 %v32
    %38 = vmatpush.msra.mxu0 %v31
    %39 = vmatpush.msra.mxu0 %v30
    %40 = vmatpush.msra.mxu0 %v29
    %41 = vmatpush.msra.mxu0 %v28
    %42 = vmatpush.msra.mxu0 %v27
    %43 = vmatpush.msra.mxu0 %v26
    %44 = vmatpush.msra.mxu0 %v25
    %45 = vmatpush.msra.mxu0 %v24
    %46 = vmatpush.msra.mxu0 %v23
    %47 = vmatpush.msra.mxu0 %v22
    %48 = vmatpush.msra.mxu0 %v21
    %49 = vmatpush.msra.mxu0 %v20
    %50 = vmatpush.msra.mxu0 %v19
    %51 = vmatpush.msra.mxu0 %v18
    %52 = vmatpush.msra.mxu0 %v17
    %53 = vmatmul.f32.gmra.mxu0 %v15
    %v54 = vpop.f32.mrf.mxu0
    %v55 = vadd.f32 %v35, %v54
    %56 = vmatmul.f32.gmra.mxu0 %v16
    %v57 = vpop.f32.mrf.mxu0
    %v58 = vadd.f32 %v35, %v57
    %59 = vdwg.mxu0
    %60 = vst [vmem:[#allocation2] sm:$0xff] %v55
    %61 = vst [vmem:[#allocation2 + $0x8] sm:$0xff] %v58
    // Predicated region
    $region14: #{lm_forward.3} parent=1 // pred_check
      _
    $region15: #{lm_forward.3} parent=1 // pred_check_branch
      %63 = sbr.rel (0) target = $region17
    $region16: #{lm_forward.3} parent=1 // pred_region
      %65 = vsyncadd [#allocation3], 0
      %s66 = sshll.u32 [#allocation2], 4
      %s67 = int_to_ptr.vmem [resolvable:$true] %s66
      %s68 = sshll.u32 %s3, 4
      %s69 = int_to_ptr.hbm [resolvable:$true] %s68
      %74 = dma.vmem_to_hbm [thread:$0]  %s67, 256, %s69, [#allocation3], 128, 128, 8
    $region17: #{lm_forward.3} parent=1 // pred_fallthru
      _
    // Predicated region
    $region18: #{lm_forward.3} parent=1 // pred_check
      _
    $region19: #{lm_forward.3} parent=1 // pred_check_branch
      %76 = sbr.rel (0) target = $region21
    $region20: #{lm_forward.3} parent=1 // pred_region
      %78 = dma.done [#allocation3], 256
    $region21: #{lm_forward.3} parent=1 // pred_fallthru
      _
    %79 = vsyncpa [#allocation3], 1

// kernel: lm_forward.2
$region0: #{lm_forward.2}
  #allocation0 [shape = 'u32[]', space=smem, size = 0x4, offset = 0x4, fixed_abs, tag = 'smem constant byte address 0x4 - core index']
  #allocation1 [shape = 'u32[72,128]{1,0:T(1,128)}', space=vmem, size = 0x9000, scoped, tag = 'internal scratch']
  #allocation2 [shape = 'f32[2,128]{1,0:T(2,128)}', space=vmem, size = 0x400, scoped, tag = 'scratch operand']
  #allocation3 [shape = 'f32[2,128]{1,0:T(2,128)}', space=vmem, size = 0x400, scoped, tag = 'scratch operand']
  %s0 = inlined_call_operand.vmem [shape: f32[2,8,32], index: 0, kind: input, shape index: {}]
  %s1 = inlined_call_operand.vmem [shape: f32[2,128], index: 1, kind: input, shape index: {}, may-alias: {1,2}]
  %s2 = inlined_call_operand.vmem [shape: f32[2,128], index: 2, kind: input, shape index: {}, may-alias: {1,2}]
  %s3 = inlined_call_operand.vmem [shape: f32[32,512], index: 3, kind: input, shape index: {}]
  %s4 = inlined_call_operand.vmem [shape: f32[128,512], index: 4, kind: input, shape index: {}]
  %s5 = inlined_call_operand.vmem [shape: f32[1,512], index: 5, kind: input, shape index: {}]
  %s6 = inlined_call_operand.vmem [shape: f32[2,8,128], index: 6, kind: output, shape index: {0}]
  %s7 = inlined_call_operand.vmem [shape: f32[2,128], index: 7, kind: output, shape index: {1}]
  %s8 = inlined_call_operand.vmem [shape: f32[2,128], index: 8, kind: output, shape index: {2}]
  %9 = xla_tuple %s6, %s7, %s8
  %s10 = sld [smem:[#allocation0]]
  $region58: #{lm_forward.2} parent=0
    _
  %s12 = ssub.s32 1, %s10
  %s13 = scalar_select 0, %s12, %s10
  // Predicated region
  $region2: #{lm_forward.2} parent=0 // pred_check
    _
  $region3: #{lm_forward.2} parent=0 // pred_check_branch
    %15 = sbr.rel (0) target = $region5
  $region4: #{lm_forward.2} parent=0 // pred_region
    _
  $region5: #{lm_forward.2} parent=0 // pred_fallthru
    _
  // Predicated region
  $region6: #{lm_forward.2} parent=0 // pred_check
    _
  $region7: #{lm_forward.2} parent=0 // pred_check_branch
    %17 = sbr.rel (0) target = $region9
  $region8: #{lm_forward.2} parent=0 // pred_region
    _
  $region9: #{lm_forward.2} parent=0 // pred_fallthru
    _
  // Predicated region
  $region10: #{lm_forward.2} parent=0 // pred_check
    _
  $region11: #{lm_forward.2} parent=0 // pred_check_branch
    %19 = sbr.rel (0) target = $region13
  $region12: #{lm_forward.2} parent=0 // pred_region
    _
  $region13: #{lm_forward.2} parent=0 // pred_fallthru
    _
  // Predicated region
  $region14: #{lm_forward.2} parent=0 // pred_check
    _
  $region15: #{lm_forward.2} parent=0 // pred_check_branch
    %21 = sbr.rel (0) target = $region17
  $region16: #{lm_forward.2} parent=0 // pred_region
    _
  $region17: #{lm_forward.2} parent=0 // pred_fallthru
    _
  // Predicated region
  $region18: #{lm_forward.2} parent=0 // pred_check
    _
  $region19: #{lm_forward.2} parent=0 // pred_check_branch
    %23 = sbr.rel (0) target = $region21
  $region20: #{lm_forward.2} parent=0 // pred_region
    _
  $region21: #{lm_forward.2} parent=0 // pred_fallthru
    _
  // Predicated region
  $region22: #{lm_forward.2} parent=0 // pred_check
    _
  $region23: #{lm_forward.2} parent=0 // pred_check_branch
    %25 = sbr.rel (0) target = $region25
  $region24: #{lm_forward.2} parent=0 // pred_region
    _
  $region25: #{lm_forward.2} parent=0 // pred_fallthru
    _
  %p26 = scmp.eq.s32.totalorder 0, 0
  // Predicated region
  $region26: #{lm_forward.2} parent=0 // pred_check
    %p27 = pneg %p26
  $region27: #{lm_forward.2} parent=0 // pred_check_branch
    %29 = sbr.rel (%p27) target = $region29
  $region28: #{lm_forward.2} parent=0 // pred_region
    %v30 = vld [vmem:[%s1] sm:$0x3]
    %31 = vst [vmem:[#allocation2] sm:$0x3] %v30
    %v32 = vld [vmem:[%s2] sm:$0x3]
    %33 = vst [vmem:[#allocation3] sm:$0x3] %v32
  $region29: #{lm_forward.2} parent=0 // pred_fallthru
    _
  %v34 = vld [vmem:[#allocation2] sm:$0x3]
  %v35 = vld [vmem:[#allocation3] sm:$0x3]
  %v36 = vld [vmem:[%s4] sm:$0xff]
  %v37 = vld [vmem:[%s4 + $0x8] sm:$0xff]
  %v38 = vld [vmem:[%s4 + $0x10] sm:$0xff]
  %v39 = vld [vmem:[%s4 + $0x18] sm:$0xff]
  %v40 = vld [vmem:[%s4 + $0x20] sm:$0xff]
  %v41 = vld [vmem:[%s4 + $0x28] sm:$0xff]
  %v42 = vld [vmem:[%s4 + $0x30] sm:$0xff]
  %v43 = vld [vmem:[%s4 + $0x38] sm:$0xff]
  %v44 = vld [vmem:[%s4 + $0x40] sm:$0xff]
  %v45 = vld [vmem:[%s4 + $0x48] sm:$0xff]
  %v46 = vld [vmem:[%s4 + $0x50] sm:$0xff]
  %v47 = vld [vmem:[%s4 + $0x58] sm:$0xff]
  %v48 = vld [vmem:[%s4 + $0x60] sm:$0xff]
  %v49 = vld [vmem:[%s4 + $0x68] sm:$0xff]
  %v50 = vld [vmem:[%s4 + $0x70] sm:$0xff]
  %v51 = vld [vmem:[%s4 + $0x78] sm:$0xff]
  %v52 = vld [vmem:[%s4 + $0x80] sm:$0xff]
  %v53 = vld [vmem:[%s4 + $0x88] sm:$0xff]
  %v54 = vld [vmem:[%s4 + $0x90] sm:$0xff]
  %v55 = vld [vmem:[%s4 + $0x98] sm:$0xff]
  %v56 = vld [vmem:[%s4 + $0xa0] sm:$0xff]
  %v57 = vld [vmem:[%s4 + $0xa8] sm:$0xff]
  %v58 = vld [vmem:[%s4 + $0xb0] sm:$0xff]
  %v59 = vld [vmem:[%s4 + $0xb8] sm:$0xff]
  %v60 = vld [vmem:[%s4 + $0xc0] sm:$0xff]
  %v61 = vld [vmem:[%s4 + $0xc8] sm:$0xff]
  %v62 = vld [vmem:[%s4 + $0xd0] sm:$0xff]
  %v63 = vld [vmem:[%s4 + $0xd8] sm:$0xff]
  %v64 = vld [vmem:[%s4 + $0xe0] sm:$0xff]
  %v65 = vld [vmem:[%s4 + $0xe8] sm:$0xff]
  %v66 = vld [vmem:[%s4 + $0xf0] sm:$0xff]
  %v67 = vld [vmem:[%s4 + $0xf8] sm:$0xff]
  %v68 = vld [vmem:[%s4 + $0x100] sm:$0xff]
  %v69 = vld [vmem:[%s4 + $0x108] sm:$0xff]
  %v70 = vld [vmem:[%s4 + $0x110] sm:$0xff]
  %v71 = vld [vmem:[%s4 + $0x118] sm:$0xff]
  %v72 = vld [vmem:[%s4 + $0x120] sm:$0xff]
  %v73 = vld [vmem:[%s4 + $0x128] sm:$0xff]
  %v74 = vld [vmem:[%s4 + $0x130] sm:$0xff]
  %v75 = vld [vmem:[%s4 + $0x138] sm:$0xff]
  %v76 = vld [vmem:[%s4 + $0x140] sm:$0xff]
  %v77 = vld [vmem:[%s4 + $0x148] sm:$0xff]
  %v78 = vld [vmem:[%s4 + $0x150] sm:$0xff]
  %v79 = vld [vmem:[%s4 + $0x158] sm:$0xff]
  %v80 = vld [vmem:[%s4 + $0x160] sm:$0xff]
  %v81 = vld [vmem:[%s4 + $0x168] sm:$0xff]
  %v82 = vld [vmem:[%s4 + $0x170] sm:$0xff]
  %v83 = vld [vmem:[%s4 + $0x178] sm:$0xff]
  %v84 = vld [vmem:[%s4 + $0x180] sm:$0xff]
  %v85 = vld [vmem:[%s4 + $0x188] sm:$0xff]
  %v86 = vld [vmem:[%s4 + $0x190] sm:$0xff]
  %v87 = vld [vmem:[%s4 + $0x198] sm:$0xff]
  %v88 = vld [vmem:[%s4 + $0x1a0] sm:$0xff]
  %v89 = vld [vmem:[%s4 + $0x1a8] sm:$0xff]
  %v90 = vld [vmem:[%s4 + $0x1b0] sm:$0xff]
  %v91 = vld [vmem:[%s4 + $0x1b8] sm:$0xff]
  %v92 = vld [vmem:[%s4 + $0x1c0] sm:$0xff]
  %v93 = vld [vmem:[%s4 + $0x1c8] sm:$0xff]
  %v94 = vld [vmem:[%s4 + $0x1d0] sm:$0xff]
  %v95 = vld [vmem:[%s4 + $0x1d8] sm:$0xff]
  %v96 = vld [vmem:[%s4 + $0x1e0] sm:$0xff]
  %v97 = vld [vmem:[%s4 + $0x1e8] sm:$0xff]
  %v98 = vld [vmem:[%s4 + $0x1f0] sm:$0xff]
  %v99 = vld [vmem:[%s4 + $0x1f8] sm:$0xff]
  %v100 = vld [vmem:[%s0] sm:$0xff]
  %v101 = vld [vmem:[%s0 + $0x8] sm:$0xff]
  %v102 = vld [vmem:[%s3] sm:$0xff]
  %v103 = vld [vmem:[%s3 + $0x8] sm:$0xff]
  %v104 = vld [vmem:[%s3 + $0x10] sm:$0xff]
  %v105 = vld [vmem:[%s3 + $0x18] sm:$0xff]
  %v106 = vld [vmem:[%s3 + $0x20] sm:$0xff]
  %v107 = vld [vmem:[%s3 + $0x28] sm:$0xff]
  %v108 = vld [vmem:[%s3 + $0x30] sm:$0xff]
  %v109 = vld [vmem:[%s3 + $0x38] sm:$0xff]
  %v110 = vld [vmem:[%s3 + $0x40] sm:$0xff]
  %v111 = vld [vmem:[%s3 + $0x48] sm:$0xff]
  %v112 = vld [vmem:[%s3 + $0x50] sm:$0xff]
  %v113 = vld [vmem:[%s3 + $0x58] sm:$0xff]
  %v114 = vld [vmem:[%s3 + $0x60] sm:$0xff]
  %v115 = vld [vmem:[%s3 + $0x68] sm:$0xff]
  %v116 = vld [vmem:[%s3 + $0x70] sm:$0xff]
  %v117 = vld [vmem:[%s3 + $0x78] sm:$0xff]
  %v118 = vld [vmem:[%s5] sm:$0xf]
  %v120 = vperm.slane %v118, 0
  %v121 = vperm.slane %v118, 1
  %v122 = vperm.slane %v118, 2
  %v123 = vperm.slane %v118, 3
  %vm128 = vcmask 261120
  %v130 = vsel %vm128, %v100, 0
  %v133 = vsel %vm128, %v101, 0
  %135 = vmatpush.msra.mxu0 0.0
  %136 = vmatpush.msra.mxu0 0.0
  %137 = vmatpush.msra.mxu0 0.0
  %138 = vmatpush.msra.mxu0 0.0
  %139 = vmatpush.msra.mxu0 0.0
  %140 = vmatpush.msra.mxu0 0.0
  %141 = vmatpush.msra.mxu0 0.0
  %142 = vmatpush.msra.mxu0 0.0
  %143 = vmatpush.msra.mxu0 0.0
  %144 = vmatpush.msra.mxu0 0.0
  %145 = vmatpush.msra.mxu0 0.0
  %146 = vmatpush.msra.mxu0 0.0
  %147 = vmatpush.msra.mxu0 %v114
  %148 = vmatpush.msra.mxu0 %v110
  %149 = vmatpush.msra.mxu0 %v106
  %150 = vmatpush.msra.mxu0 %v102
  %151 = vmatmul.f32.gmra.mxu0 %v130
  %v152 = vpop.f32.mrf.mxu0
  %v153 = vadd.f32 %v120, %v152
  %154 = vmatmul.f32.gmra.mxu0 %v133
  %v155 = vpop.f32.mrf.mxu0
  %v156 = vadd.f32 %v120, %v155
  %157 = vdwg.mxu0
  %158 = vmatpush.msra.mxu0 0.0
  %159 = vmatpush.msra.mxu0 0.0
  %160 = vmatpush.msra.mxu0 0.0
  %161 = vmatpush.msra.mxu0 0.0
  %162 = vmatpush.msra.mxu0 0.0
  %163 = vmatpush.msra.mxu0 0.0
  %164 = vmatpush.msra.mxu0 0.0
  %165 = vmatpush.msra.mxu0 0.0
  %166 = vmatpush.msra.mxu0 0.0
  %167 = vmatpush.msra.mxu0 0.0
  %168 = vmatpush.msra.mxu0 0.0
  %169 = vmatpush.msra.mxu0 0.0
  %170 = vmatpush.msra.mxu0 %v115
  %171 = vmatpush.msra.mxu0 %v111
  %172 = vmatpush.msra.mxu0 %v107
  %173 = vmatpush.msra.mxu0 %v103
  %174 = vmatmul.f32.gmra.mxu0 %v130
  %v175 = vpop.f32.mrf.mxu0
  %v176 = vadd.f32 %v121, %v175
  %177 = vmatmul.f32.gmra.mxu0 %v133
  %v178 = vpop.f32.mrf.mxu0
  %v179 = vadd.f32 %v121, %v178
  %180 = vdwg.mxu0
  %181 = vmatpush.msra.mxu0 0.0
  %182 = vmatpush.msra.mxu0 0.0
  %183 = vmatpush.msra.mxu0 0.0
  %184 = vmatpush.msra.mxu0 0.0
  %185 = vmatpush.msra.mxu0 0.0
  %186 = vmatpush.msra.mxu0 0.0
  %187 = vmatpush.msra.mxu0 0.0
  %188 = vmatpush.msra.mxu0 0.0
  %189 = vmatpush.msra.mxu0 0.0
  %190 = vmatpush.msra.mxu0 0.0
  %191 = vmatpush.msra.mxu0 0.0
  %192 = vmatpush.msra.mxu0 0.0
  %193 = vmatpush.msra.mxu0 %v116
  %194 = vmatpush.msra.mxu0 %v112
  %195 = vmatpush.msra.mxu0 %v108
  %196 = vmatpush.msra.mxu0 %v104
  %197 = vmatmul.f32.gmra.mxu0 %v130
  %v198 = vpop.f32.mrf.mxu0
  %v199 = vadd.f32 %v122, %v198
  %200 = vmatmul.f32.gmra.mxu0 %v133
  %v201 = vpop.f32.mrf.mxu0
  %v202 = vadd.f32 %v122, %v201
  %203 = vdwg.mxu0
  %204 = vmatpush.msra.mxu0 0.0
  %205 = vmatpush.msra.mxu0 0.0
  %206 = vmatpush.msra.mxu0 0.0
  %207 = vmatpush.msra.mxu0 0.0
  %208 = vmatpush.msra.mxu0 0.0
  %209 = vmatpush.msra.mxu0 0.0
  %210 = vmatpush.msra.mxu0 0.0
  %211 = vmatpush.msra.mxu0 0.0
  %212 = vmatpush.msra.mxu0 0.0
  %213 = vmatpush.msra.mxu0 0.0
  %214 = vmatpush.msra.mxu0 0.0
  %215 = vmatpush.msra.mxu0 0.0
  %216 = vmatpush.msra.mxu0 %v117
  %217 = vmatpush.msra.mxu0 %v113
  %218 = vmatpush.msra.mxu0 %v109
  %219 = vmatpush.msra.mxu0 %v105
  %220 = vmatmul.f32.gmra.mxu0 %v130
  %v221 = vpop.f32.mrf.mxu0
  %v222 = vadd.f32 %v123, %v221
  %223 = vmatmul.f32.gmra.mxu0 %v133
  %v224 = vpop.f32.mrf.mxu0
  %v225 = vadd.f32 %v123, %v224
  %226 = vdwg.mxu0
  %227 = vmatpush.msra.mxu0 %v96
  %228 = vmatpush.msra.mxu0 %v92
  %229 = vmatpush.msra.mxu0 %v88
  %230 = vmatpush.msra.mxu0 %v84
  %231 = vmatpush.msra.mxu0 %v80
  %232 = vmatpush.msra.mxu0 %v76
  %233 = vmatpush.msra.mxu0 %v72
  %234 = vmatpush.msra.mxu0 %v68
  %235 = vmatpush.msra.mxu0 %v64
  %236 = vmatpush.msra.mxu0 %v60
  %237 = vmatpush.msra.mxu0 %v56
  %238 = vmatpush.msra.mxu0 %v52
  %239 = vmatpush.msra.mxu0 %v48
  %240 = vmatpush.msra.mxu0 %v44
  %241 = vmatpush.msra.mxu0 %v40
  %242 = vmatpush.msra.mxu0 %v36
  %243 = vmatmul.f32.gmra.mxu0 %v34
  %v244 = vpop.f32.mrf.mxu0
  %v245 = vadd.f32 0.0, %v244
  %246 = vdwg.mxu0
  %247 = vmatpush.msra.mxu0 %v97
  %248 = vmatpush.msra.mxu0 %v93
  %249 = vmatpush.msra.mxu0 %v89
  %250 = vmatpush.msra.mxu0 %v85
  %251 = vmatpush.msra.mxu0 %v81
  %252 = vmatpush.msra.mxu0 %v77
  %253 = vmatpush.msra.mxu0 %v73
  %254 = vmatpush.msra.mxu0 %v69
  %255 = vmatpush.msra.mxu0 %v65
  %256 = vmatpush.msra.mxu0 %v61
  %257 = vmatpush.msra.mxu0 %v57
  %258 = vmatpush.msra.mxu0 %v53
  %259 = vmatpush.msra.mxu0 %v49
  %260 = vmatpush.msra.mxu0 %v45
  %261 = vmatpush.msra.mxu0 %v41
  %262 = vmatpush.msra.mxu0 %v37
  %263 = vmatmul.f32.gmra.mxu0 %v34
  %v264 = vpop.f32.mrf.mxu0
  %v265 = vadd.f32 0.0, %v264
  %266 = vdwg.mxu0
  %267 = vmatpush.msra.mxu0 %v98
  %268 = vmatpush.msra.mxu0 %v94
  %269 = vmatpush.msra.mxu0 %v90
  %270 = vmatpush.msra.mxu0 %v86
  %271 = vmatpush.msra.mxu0 %v82
  %272 = vmatpush.msra.mxu0 %v78
  %273 = vmatpush.msra.mxu0 %v74
  %274 = vmatpush.msra.mxu0 %v70
  %275 = vmatpush.msra.mxu0 %v66
  %276 = vmatpush.msra.mxu0 %v62
  %277 = vmatpush.msra.mxu0 %v58
  %278 = vmatpush.msra.mxu0 %v54
  %279 = vmatpush.msra.mxu0 %v50
  %280 = vmatpush.msra.mxu0 %v46
  %281 = vmatpush.msra.mxu0 %v42
  %282 = vmatpush.msra.mxu0 %v38
  %283 = vmatmul.f32.gmra.mxu0 %v34
  %v284 = vpop.f32.mrf.mxu0
  %v285 = vadd.f32 0.0, %v284
  %286 = vdwg.mxu0
  %287 = vmatpush.msra.mxu0 %v99
  %288 = vmatpush.msra.mxu0 %v95
  %289 = vmatpush.msra.mxu0 %v91
  %290 = vmatpush.msra.mxu0 %v87
  %291 = vmatpush.msra.mxu0 %v83
  %292 = vmatpush.msra.mxu0 %v79
  %293 = vmatpush.msra.mxu0 %v75
  %294 = vmatpush.msra.mxu0 %v71
  %295 = vmatpush.msra.mxu0 %v67
  %296 = vmatpush.msra.mxu0 %v63
  %297 = vmatpush.msra.mxu0 %v59
  %298 = vmatpush.msra.mxu0 %v55
  %299 = vmatpush.msra.mxu0 %v51
  %300 = vmatpush.msra.mxu0 %v47
  %301 = vmatpush.msra.mxu0 %v43
  %302 = vmatpush.msra.mxu0 %v39
  %303 = vmatmul.f32.gmra.mxu0 %v34
  %v304 = vpop.f32.mrf.mxu0
  %v305 = vadd.f32 0.0, %v304
  %306 = vdwg.mxu0
  %v311 = vrot.slane %v245, 1
  %v312 = vrot.slane %v265, 1
  %v313 = vrot.slane %v285, 1
  %v314 = vrot.slane %v305, 1
  %v323 = vadd.f32 %v153, %v245
  %v324 = vadd.f32 %v176, %v265
  %v325 = vadd.f32 %v199, %v285
  %v326 = vadd.f32 %v222, %v305
  %v327 = vadd.f32 %v156, %v311
  %v328 = vadd.f32 %v179, %v312
  %v329 = vadd.f32 %v202, %v313
  %v330 = vadd.f32 %v225, %v314
  %v331 = vxor.u32 %v323, 2147483648
  %v332 = vxor.u32 %v324, 2147483648
  %v333 = vxor.u32 %v325, 2147483648
  %v334 = vxor.u32 %v327, 2147483648
  %v335 = vxor.u32 %v328, 2147483648
  %v336 = vxor.u32 %v329, 2147483648
  %v337 = vmul.f32 %v331, 1.442695
  %v338 = vpow.pop %v337
  %v339 = vmul.f32 %v332, 1.442695
  %v340 = vpow.pop %v339
  %v341 = vmul.f32 %v333, 1.442695
  %v342 = vpow.pop %v341
  %v343 = vmul.f32 %v334, 1.442695
  %v344 = vpow.pop %v343
  %v345 = vmul.f32 %v335, 1.442695
  %v346 = vpow.pop %v345
  %v347 = vmul.f32 %v336, 1.442695
  %v348 = vpow.pop %v347
  %v349 = vadd.f32 %v338, 1.0
  %v350 = vadd.f32 %v340, 1.0
  %v351 = vadd.f32 %v342, 1.0
  %v352 = vadd.f32 %v344, 1.0
  %v353 = vadd.f32 %v346, 1.0
  %v354 = vadd.f32 %v348, 1.0
  %v355 = vrcp.pop %v349
  %v356 = vmul.f32 %v349, %v355
  %v357 = vsub.f32 1.0, %v356
  %v358 = vmul.f32 %v355, %v357
  %v359 = vadd.f32 %v355, %v358
  %vm360 = vweird.f32 %v349
  %vm361 = vweird.f32 %v355
  %vm362 = vmor %vm360, %vm361
  %v363 = vsel %vm362, %v355, %v359
  %v364 = vand.u32 2147483647, %v349
  %vm365 = vcmp.eq.f32.partialorder %v364, 8.507059e+37
  %v366 = vand.u32 %v349, 2147483648
  %v367 = vor.u32 1.1754944e-38, %v366
  %v368 = vsel %vm365, %v367, %v363
  %v369 = vmul.f32 1.0, %v368
  %v370 = vrcp.pop %v350
  %v371 = vmul.f32 %v350, %v370
  %v372 = vsub.f32 1.0, %v371
  %v373 = vmul.f32 %v370, %v372
  %v374 = vadd.f32 %v370, %v373
  %vm375 = vweird.f32 %v350
  %vm376 = vweird.f32 %v370
  %vm377 = vmor %vm375, %vm376
  %v378 = vsel %vm377, %v370, %v374
  %v379 = vand.u32 2147483647, %v350
  %vm380 = vcmp.eq.f32.partialorder %v379, 8.507059e+37
  %v381 = vand.u32 %v350, 2147483648
  %v382 = vor.u32 1.1754944e-38, %v381
  %v383 = vsel %vm380, %v382, %v378
  %v384 = vmul.f32 1.0, %v383
  %v385 = vrcp.pop %v351
  %v386 = vmul.f32 %v351, %v385
  %v387 = vsub.f32 1.0, %v386
  %v388 = vmul.f32 %v385, %v387
  %v389 = vadd.f32 %v385, %v388
  %vm390 = vweird.f32 %v351
  %vm391 = vweird.f32 %v385
  %vm392 = vmor %vm390, %vm391
  %v393 = vsel %vm392, %v385, %v389
  %v394 = vand.u32 2147483647, %v351
  %vm395 = vcmp.eq.f32.partialorder %v394, 8.507059e+37
  %v396 = vand.u32 %v351, 2147483648
  %v397 = vor.u32 1.1754944e-38, %v396
  %v398 = vsel %vm395, %v397, %v393
  %v399 = vmul.f32 1.0, %v398
  %v400 = vrcp.pop %v352
  %v401 = vmul.f32 %v352, %v400
  %v402 = vsub.f32 1.0, %v401
  %v403 = vmul.f32 %v400, %v402
  %v404 = vadd.f32 %v400, %v403
  %vm405 = vweird.f32 %v352
  %vm406 = vweird.f32 %v400
  %vm407 = vmor %vm405, %vm406
  %v408 = vsel %vm407, %v400, %v404
  %v409 = vand.u32 2147483647, %v352
  %vm410 = vcmp.eq.f32.partialorder %v409, 8.507059e+37
  %v411 = vand.u32 %v352, 2147483648
  %v412 = vor.u32 1.1754944e-38, %v411
  %v413 = vsel %vm410, %v412, %v408
  %v414 = vmul.f32 1.0, %v413
  %v415 = vrcp.pop %v353
  %v416 = vmul.f32 %v353, %v415
  %v417 = vsub.f32 1.0, %v416
  %v418 = vmul.f32 %v415, %v417
  %v419 = vadd.f32 %v415, %v418
  %vm420 = vweird.f32 %v353
  %vm421 = vweird.f32 %v415
  %vm422 = vmor %vm420, %vm421
  %v423 = vsel %vm422, %v415, %v419
  %v424 = vand.u32 2147483647, %v353
  %vm425 = vcmp.eq.f32.partialorder %v424, 8.507059e+37
  %v426 = vand.u32 %v353, 2147483648
  %v427 = vor.u32 1.1754944e-38, %v426
  %v428 = vsel %vm425, %v427, %v423
  %v429 = vmul.f32 1.0, %v428
  %v430 = vrcp.pop %v354
  %v431 = vmul.f32 %v354, %v430
  %v432 = vsub.f32 1.0, %v431
  %v433 = vmul.f32 %v430, %v432
  %v434 = vadd.f32 %v430, %v433
  %vm435 = vweird.f32 %v354
  %vm436 = vweird.f32 %v430
  %vm437 = vmor %vm435, %vm436
  %v438 = vsel %vm437, %v430, %v434
  %v439 = vand.u32 2147483647, %v354
  %vm440 = vcmp.eq.f32.partialorder %v439, 8.507059e+37
  %v441 = vand.u32 %v354, 2147483648
  %v442 = vor.u32 1.1754944e-38, %v441
  %v443 = vsel %vm440, %v442, %v438
  %v444 = vmul.f32 1.0, %v443
  %v445 = vtanh.pop %v326
  %v446 = vtanh.pop %v330
  %v448 = vrot.slane %v35, 1
  %v451 = vmul.f32 %v384, %v35
  %v452 = vmul.f32 %v429, %v448
  %v453 = vmul.f32 %v369, %v445
  %v454 = vmul.f32 %v414, %v446
  %v455 = vadd.f32 %v451, %v453
  %v456 = vadd.f32 %v452, %v454
  %v457 = vtanh.pop %v455
  %v458 = vtanh.pop %v456
  %v459 = vmul.f32 %v399, %v457
  %v460 = vmul.f32 %v444, %v458
  %461 = vst [vmem:[%s6] sm:$0x1] %v459
  %462 = vst [vmem:[%s6 + $0x8] sm:$0x1] %v460
  %v465 = vrot.slane %v460, 7
  %vm466 = vcmask 1041409
  %v467 = vsel %vm466, %v465, %v459
  %469 = vmatpush.msra.mxu0 %v96
  %470 = vmatpush.msra.mxu0 %v92
  %471 = vmatpush.msra.mxu0 %v88
  %472 = vmatpush.msra.mxu0 %v84
  %473 = vmatpush.msra.mxu0 %v80
  %474 = vmatpush.msra.mxu0 %v76
  %475 = vmatpush.msra.mxu0 %v72
  %476 = vmatpush.msra.mxu0 %v68
  %477 = vmatpush.msra.mxu0 %v64
  %478 = vmatpush.msra.mxu0 %v60
  %479 = vmatpush.msra.mxu0 %v56
  %480 = vmatpush.msra.mxu0 %v52
  %481 = vmatpush.msra.mxu0 %v48
  %482 = vmatpush.msra.mxu0 %v44
  %483 = vmatpush.msra.mxu0 %v40
  %484 = vmatpush.msra.mxu0 %v36
  %485 = vmatmul.f32.gmra.mxu0 %v467
  %v486 = vpop.f32.mrf.mxu0
  %v487 = vadd.f32 0.0, %v486
  %488 = vdwg.mxu0
  %489 = vmatpush.msra.mxu0 %v97
  %490 = vmatpush.msra.mxu0 %v93
  %491 = vmatpush.msra.mxu0 %v89
  %492 = vmatpush.msra.mxu0 %v85
  %493 = vmatpush.msra.mxu0 %v81
  %494 = vmatpush.msra.mxu0 %v77
  %495 = vmatpush.msra.mxu0 %v73
  %496 = vmatpush.msra.mxu0 %v69
  %497 = vmatpush.msra.mxu0 %v65
  %498 = vmatpush.msra.mxu0 %v61
  %499 = vmatpush.msra.mxu0 %v57
  %500 = vmatpush.msra.mxu0 %v53
  %501 = vmatpush.msra.mxu0 %v49
  %502 = vmatpush.msra.mxu0 %v45
  %503 = vmatpush.msra.mxu0 %v41
  %504 = vmatpush.msra.mxu0 %v37
  %505 = vmatmul.f32.gmra.mxu0 %v467
  %v506 = vpop.f32.mrf.mxu0
  %v507 = vadd.f32 0.0, %v506
  %508 = vdwg.mxu0
  %509 = vmatpush.msra.mxu0 %v98
  %510 = vmatpush.msra.mxu0 %v94
  %511 = vmatpush.msra.mxu0 %v90
  %512 = vmatpush.msra.mxu0 %v86
  %513 = vmatpush.msra.mxu0 %v82
  %514 = vmatpush.msra.mxu0 %v78
  %515 = vmatpush.msra.mxu0 %v74
  %516 = vmatpush.msra.mxu0 %v70
  %517 = vmatpush.msra.mxu0 %v66
  %518 = vmatpush.msra.mxu0 %v62
  %519 = vmatpush.msra.mxu0 %v58
  %520 = vmatpush.msra.mxu0 %v54
  %521 = vmatpush.msra.mxu0 %v50
  %522 = vmatpush.msra.mxu0 %v46
  %523 = vmatpush.msra.mxu0 %v42
  %524 = vmatpush.msra.mxu0 %v38
  %525 = vmatmul.f32.gmra.mxu0 %v467
  %v526 = vpop.f32.mrf.mxu0
  %v527 = vadd.f32 0.0, %v526
  %528 = vdwg.mxu0
  %529 = vmatpush.msra.mxu0 %v99
  %530 = vmatpush.msra.mxu0 %v95
  %531 = vmatpush.msra.mxu0 %v91
  %532 = vmatpush.msra.mxu0 %v87
  %533 = vmatpush.msra.mxu0 %v83
  %534 = vmatpush.msra.mxu0 %v79
  %535 = vmatpush.msra.mxu0 %v75
  %536 = vmatpush.msra.mxu0 %v71
  %537 = vmatpush.msra.mxu0 %v67
  %538 = vmatpush.msra.mxu0 %v63
  %539 = vmatpush.msra.mxu0 %v59
  %540 = vmatpush.msra.mxu0 %v55
  %541 = vmatpush.msra.mxu0 %v51
  %542 = vmatpush.msra.mxu0 %v47
  %543 = vmatpush.msra.mxu0 %v43
  %544 = vmatpush.msra.mxu0 %v39
  %545 = vmatmul.f32.gmra.mxu0 %v467
  %v546 = vpop.f32.mrf.mxu0
  %v547 = vadd.f32 0.0, %v546
  %548 = vdwg.mxu0
  %v553 = vrot.slane %v487, 7
  %v554 = vrot.slane %v507, 7
  %v555 = vrot.slane %v527, 7
  %v556 = vrot.slane %v547, 7
  %v565 = vadd.f32 %v153, %v553
  %v566 = vadd.f32 %v176, %v554
  %v567 = vadd.f32 %v199, %v555
  %v568 = vadd.f32 %v222, %v556
  %v569 = vadd.f32 %v156, %v487
  %v570 = vadd.f32 %v179, %v507
  %v571 = vadd.f32 %v202, %v527
  %v572 = vadd.f32 %v225, %v547
  %v573 = vxor.u32 %v565, 2147483648
  %v574 = vxor.u32 %v566, 2147483648
  %v575 = vxor.u32 %v567, 2147483648
  %v576 = vxor.u32 %v569, 2147483648
  %v577 = vxor.u32 %v570, 2147483648
  %v578 = vxor.u32 %v571, 2147483648
  %v579 = vmul.f32 %v573, 1.442695
  %v580 = vpow.pop %v579
  %v581 = vmul.f32 %v574, 1.442695
  %v582 = vpow.pop %v581
  %v583 = vmul.f32 %v575, 1.442695
  %v584 = vpow.pop %v583
  %v585 = vmul.f32 %v576, 1.442695
  %v586 = vpow.pop %v585
  %v587 = vmul.f32 %v577, 1.442695
  %v588 = vpow.pop %v587
  %v589 = vmul.f32 %v578, 1.442695
  %v590 = vpow.pop %v589
  %v591 = vadd.f32 %v580, 1.0
  %v592 = vadd.f32 %v582, 1.0
  %v593 = vadd.f32 %v584, 1.0
  %v594 = vadd.f32 %v586, 1.0
  %v595 = vadd.f32 %v588, 1.0
  %v596 = vadd.f32 %v590, 1.0
  %v597 = vrcp.pop %v591
  %v598 = vmul.f32 %v591, %v597
  %v599 = vsub.f32 1.0, %v598
  %v600 = vmul.f32 %v597, %v599
  %v601 = vadd.f32 %v597, %v600
  %vm602 = vweird.f32 %v591
  %vm603 = vweird.f32 %v597
  %vm604 = vmor %vm602, %vm603
  %v605 = vsel %vm604, %v597, %v601
  %v606 = vand.u32 2147483647, %v591
  %vm607 = vcmp.eq.f32.partialorder %v606, 8.507059e+37
  %v608 = vand.u32 %v591, 2147483648
  %v609 = vor.u32 1.1754944e-38, %v608
  %v610 = vsel %vm607, %v609, %v605
  %v611 = vmul.f32 1.0, %v610
  %v612 = vrcp.pop %v592
  %v613 = vmul.f32 %v592, %v612
  %v614 = vsub.f32 1.0, %v613
  %v615 = vmul.f32 %v612, %v614
  %v616 = vadd.f32 %v612, %v615
  %vm617 = vweird.f32 %v592
  %vm618 = vweird.f32 %v612
  %vm619 = vmor %vm617, %vm618
  %v620 = vsel %vm619, %v612, %v616
  %v621 = vand.u32 2147483647, %v592
  %vm622 = vcmp.eq.f32.partialorder %v621, 8.507059e+37
  %v623 = vand.u32 %v592, 2147483648
  %v624 = vor.u32 1.1754944e-38, %v623
  %v625 = vsel %vm622, %v624, %v620
  %v626 = vmul.f32 1.0, %v625
  %v627 = vrcp.pop %v593
  %v628 = vmul.f32 %v593, %v627
  %v629 = vsub.f32 1.0, %v628
  %v630 = vmul.f32 %v627, %v629
  %v631 = vadd.f32 %v627, %v630
  %vm632 = vweird.f32 %v593
  %vm633 = vweird.f32 %v627
  %vm634 = vmor %vm632, %vm633
  %v635 = vsel %vm634, %v627, %v631
  %v636 = vand.u32 2147483647, %v593
  %vm637 = vcmp.eq.f32.partialorder %v636, 8.507059e+37
  %v638 = vand.u32 %v593, 2147483648
  %v639 = vor.u32 1.1754944e-38, %v638
  %v640 = vsel %vm637, %v639, %v635
  %v641 = vmul.f32 1.0, %v640
  %v642 = vrcp.pop %v594
  %v643 = vmul.f32 %v594, %v642
  %v644 = vsub.f32 1.0, %v643
  %v645 = vmul.f32 %v642, %v644
  %v646 = vadd.f32 %v642, %v645
  %vm647 = vweird.f32 %v594
  %vm648 = vweird.f32 %v642
  %vm649 = vmor %vm647, %vm648
  %v650 = vsel %vm649, %v642, %v646
  %v651 = vand.u32 2147483647, %v594
  %vm652 = vcmp.eq.f32.partialorder %v651, 8.507059e+37
  %v653 = vand.u32 %v594, 2147483648
  %v654 = vor.u32 1.1754944e-38, %v653
  %v655 = vsel %vm652, %v654, %v650
  %v656 = vmul.f32 1.0, %v655
  %v657 = vrcp.pop %v595
  %v658 = vmul.f32 %v595, %v657
  %v659 = vsub.f32 1.0, %v658
  %v660 = vmul.f32 %v657, %v659
  %v661 = vadd.f32 %v657, %v660
  %vm662 = vweird.f32 %v595
  %vm663 = vweird.f32 %v657
  %vm664 = vmor %vm662, %vm663
  %v665 = vsel %vm664, %v657, %v661
  %v666 = vand.u32 2147483647, %v595
  %vm667 = vcmp.eq.f32.partialorder %v666, 8.507059e+37
  %v668 = vand.u32 %v595, 2147483648
  %v669 = vor.u32 1.1754944e-38, %v668
  %v670 = vsel %vm667, %v669, %v665
  %v671 = vmul.f32 1.0, %v670
  %v672 = vrcp.pop %v596
  %v673 = vmul.f32 %v596, %v672
  %v674 = vsub.f32 1.0, %v673
  %v675 = vmul.f32 %v672, %v674
  %v676 = vadd.f32 %v672, %v675
  %vm677 = vweird.f32 %v596
  %vm678 = vweird.f32 %v672
  %vm679 = vmor %vm677, %vm678
  %v680 = vsel %vm679, %v672, %v676
  %v681 = vand.u32 2147483647, %v596
  %vm682 = vcmp.eq.f32.partialorder %v681, 8.507059e+37
  %v683 = vand.u32 %v596, 2147483648
  %v684 = vor.u32 1.1754944e-38, %v683
  %v685 = vsel %vm682, %v684, %v680
  %v686 = vmul.f32 1.0, %v685
  %v687 = vtanh.pop %v568
  %v688 = vtanh.pop %v572
  %v691 = vrot.slane %v455, 7
  %v692 = vrot.slane %v456, 7
  %v695 = vmul.f32 %v626, %v691
  %v696 = vmul.f32 %v671, %v692
  %v697 = vmul.f32 %v611, %v687
  %v698 = vmul.f32 %v656, %v688
  %v699 = vadd.f32 %v695, %v697
  %v700 = vadd.f32 %v696, %v698
  %v701 = vtanh.pop %v699
  %v702 = vtanh.pop %v700
  %v703 = vmul.f32 %v641, %v701
  %v704 = vmul.f32 %v686, %v702
  %705 = vst [vmem:[%s6] sm:$0x2] %v703
  %706 = vst [vmem:[%s6 + $0x8] sm:$0x2] %v704
  %v709 = vrot.slane %v703, 1
  %v710 = vsel %vm466, %v704, %v709
  %712 = vmatpush.msra.mxu0 %v96
  %713 = vmatpush.msra.mxu0 %v92
  %714 = vmatpush.msra.mxu0 %v88
  %715 = vmatpush.msra.mxu0 %v84
  %716 = vmatpush.msra.mxu0 %v80
  %717 = vmatpush.msra.mxu0 %v76
  %718 = vmatpush.msra.mxu0 %v72
  %719 = vmatpush.msra.mxu0 %v68
  %720 = vmatpush.msra.mxu0 %v64
  %721 = vmatpush.msra.mxu0 %v60
  %722 = vmatpush.msra.mxu0 %v56
  %723 = vmatpush.msra.mxu0 %v52
  %724 = vmatpush.msra.mxu0 %v48
  %725 = vmatpush.msra.mxu0 %v44
  %726 = vmatpush.msra.mxu0 %v40
  %727 = vmatpush.msra.mxu0 %v36
  %728 = vmatmul.f32.gmra.mxu0 %v710
  %v729 = vpop.f32.mrf.mxu0
  %v730 = vadd.f32 0.0, %v729
  %731 = vdwg.mxu0
  %732 = vmatpush.msra.mxu0 %v97
  %733 = vmatpush.msra.mxu0 %v93
  %734 = vmatpush.msra.mxu0 %v89
  %735 = vmatpush.msra.mxu0 %v85
  %736 = vmatpush.msra.mxu0 %v81
  %737 = vmatpush.msra.mxu0 %v77
  %738 = vmatpush.msra.mxu0 %v73
  %739 = vmatpush.msra.mxu0 %v69
  %740 = vmatpush.msra.mxu0 %v65
  %741 = vmatpush.msra.mxu0 %v61
  %742 = vmatpush.msra.mxu0 %v57
  %743 = vmatpush.msra.mxu0 %v53
  %744 = vmatpush.msra.mxu0 %v49
  %745 = vmatpush.msra.mxu0 %v45
  %746 = vmatpush.msra.mxu0 %v41
  %747 = vmatpush.msra.mxu0 %v37
  %748 = vmatmul.f32.gmra.mxu0 %v710
  %v749 = vpop.f32.mrf.mxu0
  %v750 = vadd.f32 0.0, %v749
  %751 = vdwg.mxu0
  %752 = vmatpush.msra.mxu0 %v98
  %753 = vmatpush.msra.mxu0 %v94
  %754 = vmatpush.msra.mxu0 %v90
  %755 = vmatpush.msra.mxu0 %v86
  %756 = vmatpush.msra.mxu0 %v82
  %757 = vmatpush.msra.mxu0 %v78
  %758 = vmatpush.msra.mxu0 %v74
  %759 = vmatpush.msra.mxu0 %v70
  %760 = vmatpush.msra.mxu0 %v66
  %761 = vmatpush.msra.mxu0 %v62
  %762 = vmatpush.msra.mxu0 %v58
  %763 = vmatpush.msra.mxu0 %v54
  %764 = vmatpush.msra.mxu0 %v50
  %765 = vmatpush.msra.mxu0 %v46
  %766 = vmatpush.msra.mxu0 %v42
  %767 = vmatpush.msra.mxu0 %v38
  %768 = vmatmul.f32.gmra.mxu0 %v710
  %v769 = vpop.f32.mrf.mxu0
  %v770 = vadd.f32 0.0, %v769
  %771 = vdwg.mxu0
  %772 = vmatpush.msra.mxu0 %v99
  %773 = vmatpush.msra.mxu0 %v95
  %774 = vmatpush.msra.mxu0 %v91
  %775 = vmatpush.msra.mxu0 %v87
  %776 = vmatpush.msra.mxu0 %v83
  %777 = vmatpush.msra.mxu0 %v79
  %778 = vmatpush.msra.mxu0 %v75
  %779 = vmatpush.msra.mxu0 %v71
  %780 = vmatpush.msra.mxu0 %v67
  %781 = vmatpush.msra.mxu0 %v63
  %782 = vmatpush.msra.mxu0 %v59
  %783 = vmatpush.msra.mxu0 %v55
  %784 = vmatpush.msra.mxu0 %v51
  %785 = vmatpush.msra.mxu0 %v47
  %786 = vmatpush.msra.mxu0 %v43
  %787 = vmatpush.msra.mxu0 %v39
  %788 = vmatmul.f32.gmra.mxu0 %v710
  %v789 = vpop.f32.mrf.mxu0
  %v790 = vadd.f32 0.0, %v789
  %791 = vdwg.mxu0
  %v796 = vrot.slane %v730, 6
  %v797 = vrot.slane %v750, 6
  %v798 = vrot.slane %v770, 6
  %v799 = vrot.slane %v790, 6
  %v800 = vrot.slane %v730, 7
  %v801 = vrot.slane %v750, 7
  %v802 = vrot.slane %v770, 7
  %v803 = vrot.slane %v790, 7
  %v812 = vadd.f32 %v153, %v796
  %v813 = vadd.f32 %v176, %v797
  %v814 = vadd.f32 %v199, %v798
  %v815 = vadd.f32 %v222, %v799
  %v816 = vadd.f32 %v156, %v800
  %v817 = vadd.f32 %v179, %v801
  %v818 = vadd.f32 %v202, %v802
  %v819 = vadd.f32 %v225, %v803
  %v820 = vxor.u32 %v812, 2147483648
  %v821 = vxor.u32 %v813, 2147483648
  %v822 = vxor.u32 %v814, 2147483648
  %v823 = vxor.u32 %v816, 2147483648
  %v824 = vxor.u32 %v817, 2147483648
  %v825 = vxor.u32 %v818, 2147483648
  %v826 = vmul.f32 %v820, 1.442695
  %v827 = vpow.pop %v826
  %v828 = vmul.f32 %v821, 1.442695
  %v829 = vpow.pop %v828
  %v830 = vmul.f32 %v822, 1.442695
  %v831 = vpow.pop %v830
  %v832 = vmul.f32 %v823, 1.442695
  %v833 = vpow.pop %v832
  %v834 = vmul.f32 %v824, 1.442695
  %v835 = vpow.pop %v834
  %v836 = vmul.f32 %v825, 1.442695
  %v837 = vpow.pop %v836
  %v838 = vadd.f32 %v827, 1.0
  %v839 = vadd.f32 %v829, 1.0
  %v840 = vadd.f32 %v831, 1.0
  %v841 = vadd.f32 %v833, 1.0
  %v842 = vadd.f32 %v835, 1.0
  %v843 = vadd.f32 %v837, 1.0
  %v844 = vrcp.pop %v838
  %v845 = vmul.f32 %v838, %v844
  %v846 = vsub.f32 1.0, %v845
  %v847 = vmul.f32 %v844, %v846
  %v848 = vadd.f32 %v844, %v847
  %vm849 = vweird.f32 %v838
  %vm850 = vweird.f32 %v844
  %vm851 = vmor %vm849, %vm850
  %v852 = vsel %vm851, %v844, %v848
  %v853 = vand.u32 2147483647, %v838
  %vm854 = vcmp.eq.f32.partialorder %v853, 8.507059e+37
  %v855 = vand.u32 %v838, 2147483648
  %v856 = vor.u32 1.1754944e-38, %v855
  %v857 = vsel %vm854, %v856, %v852
  %v858 = vmul.f32 1.0, %v857
  %v859 = vrcp.pop %v839
  %v860 = vmul.f32 %v839, %v859
  %v861 = vsub.f32 1.0, %v860
  %v862 = vmul.f32 %v859, %v861
  %v863 = vadd.f32 %v859, %v862
  %vm864 = vweird.f32 %v839
  %vm865 = vweird.f32 %v859
  %vm866 = vmor %vm864, %vm865
  %v867 = vsel %vm866, %v859, %v863
  %v868 = vand.u32 2147483647, %v839
  %vm869 = vcmp.eq.f32.partialorder %v868, 8.507059e+37
  %v870 = vand.u32 %v839, 2147483648
  %v871 = vor.u32 1.1754944e-38, %v870
  %v872 = vsel %vm869, %v871, %v867
  %v873 = vmul.f32 1.0, %v872
  %v874 = vrcp.pop %v840
  %v875 = vmul.f32 %v840, %v874
  %v876 = vsub.f32 1.0, %v875
  %v877 = vmul.f32 %v874, %v876
  %v878 = vadd.f32 %v874, %v877
  %vm879 = vweird.f32 %v840
  %vm880 = vweird.f32 %v874
  %vm881 = vmor %vm879, %vm880
  %v882 = vsel %vm881, %v874, %v878
  %v883 = vand.u32 2147483647, %v840
  %vm884 = vcmp.eq.f32.partialorder %v883, 8.507059e+37
  %v885 = vand.u32 %v840, 2147483648
  %v886 = vor.u32 1.1754944e-38, %v885
  %v887 = vsel %vm884, %v886, %v882
  %v888 = vmul.f32 1.0, %v887
  %v889 = vrcp.pop %v841
  %v890 = vmul.f32 %v841, %v889
  %v891 = vsub.f32 1.0, %v890
  %v892 = vmul.f32 %v889, %v891
  %v893 = vadd.f32 %v889, %v892
  %vm894 = vweird.f32 %v841
  %vm895 = vweird.f32 %v889
  %vm896 = vmor %vm894, %vm895
  %v897 = vsel %vm896, %v889, %v893
  %v898 = vand.u32 2147483647, %v841
  %vm899 = vcmp.eq.f32.partialorder %v898, 8.507059e+37
  %v900 = vand.u32 %v841, 2147483648
  %v901 = vor.u32 1.1754944e-38, %v900
  %v902 = vsel %vm899, %v901, %v897
  %v903 = vmul.f32 1.0, %v902
  %v904 = vrcp.pop %v842
  %v905 = vmul.f32 %v842, %v904
  %v906 = vsub.f32 1.0, %v905
  %v907 = vmul.f32 %v904, %v906
  %v908 = vadd.f32 %v904, %v907
  %vm909 = vweird.f32 %v842
  %vm910 = vweird.f32 %v904
  %vm911 = vmor %vm909, %vm910
  %v912 = vsel %vm911, %v904, %v908
  %v913 = vand.u32 2147483647, %v842
  %vm914 = vcmp.eq.f32.partialorder %v913, 8.507059e+37
  %v915 = vand.u32 %v842, 2147483648
  %v916 = vor.u32 1.1754944e-38, %v915
  %v917 = vsel %vm914, %v916, %v912
  %v918 = vmul.f32 1.0, %v917
  %v919 = vrcp.pop %v843
  %v920 = vmul.f32 %v843, %v919
  %v921 = vsub.f32 1.0, %v920
  %v922 = vmul.f32 %v919, %v921
  %v923 = vadd.f32 %v919, %v922
  %vm924 = vweird.f32 %v843
  %vm925 = vweird.f32 %v919
  %vm926 = vmor %vm924, %vm925
  %v927 = vsel %vm926, %v919, %v923
  %v928 = vand.u32 2147483647, %v843
  %vm929 = vcmp.eq.f32.partialorder %v928, 8.507059e+37
  %v930 = vand.u32 %v843, 2147483648
  %v931 = vor.u32 1.1754944e-38, %v930
  %v932 = vsel %vm929, %v931, %v927
  %v933 = vmul.f32 1.0, %v932
  %v934 = vtanh.pop %v815
  %v935 = vtanh.pop %v819
  %v938 = vrot.slane %v699, 7
  %v939 = vrot.slane %v700, 7
  %v942 = vmul.f32 %v873, %v938
  %v943 = vmul.f32 %v918, %v939
  %v944 = vmul.f32 %v858, %v934
  %v945 = vmul.f32 %v903, %v935
  %v946 = vadd.f32 %v942, %v944
  %v947 = vadd.f32 %v943, %v945
  %v948 = vtanh.pop %v946
  %v949 = vtanh.pop %v947
  %v950 = vmul.f32 %v888, %v948
  %v951 = vmul.f32 %v933, %v949
  %952 = vst [vmem:[%s6] sm:$0x4] %v950
  %953 = vst [vmem:[%s6 + $0x8] sm:$0x4] %v951
  %v956 = vrot.slane %v950, 2
  %v957 = vrot.slane %v951, 1
  %v958 = vsel %vm466, %v957, %v956
  %960 = vmatpush.msra.mxu0 %v96
  %961 = vmatpush.msra.mxu0 %v92
  %962 = vmatpush.msra.mxu0 %v88
  %963 = vmatpush.msra.mxu0 %v84
  %964 = vmatpush.msra.mxu0 %v80
  %965 = vmatpush.msra.mxu0 %v76
  %966 = vmatpush.msra.mxu0 %v72
  %967 = vmatpush.msra.mxu0 %v68
  %968 = vmatpush.msra.mxu0 %v64
  %969 = vmatpush.msra.mxu0 %v60
  %970 = vmatpush.msra.mxu0 %v56
  %971 = vmatpush.msra.mxu0 %v52
  %972 = vmatpush.msra.mxu0 %v48
  %973 = vmatpush.msra.mxu0 %v44
  %974 = vmatpush.msra.mxu0 %v40
  %975 = vmatpush.msra.mxu0 %v36
  %976 = vmatmul.f32.gmra.mxu0 %v958
  %v977 = vpop.f32.mrf.mxu0
  %v978 = vadd.f32 0.0, %v977
  %979 = vdwg.mxu0
  %980 = vmatpush.msra.mxu0 %v97
  %981 = vmatpush.msra.mxu0 %v93
  %982 = vmatpush.msra.mxu0 %v89
  %983 = vmatpush.msra.mxu0 %v85
  %984 = vmatpush.msra.mxu0 %v81
  %985 = vmatpush.msra.mxu0 %v77
  %986 = vmatpush.msra.mxu0 %v73
  %987 = vmatpush.msra.mxu0 %v69
  %988 = vmatpush.msra.mxu0 %v65
  %989 = vmatpush.msra.mxu0 %v61
  %990 = vmatpush.msra.mxu0 %v57
  %991 = vmatpush.msra.mxu0 %v53
  %992 = vmatpush.msra.mxu0 %v49
  %993 = vmatpush.msra.mxu0 %v45
  %994 = vmatpush.msra.mxu0 %v41
  %995 = vmatpush.msra.mxu0 %v37
  %996 = vmatmul.f32.gmra.mxu0 %v958
  %v997 = vpop.f32.mrf.mxu0
  %v998 = vadd.f32 0.0, %v997
  %999 = vdwg.mxu0
  %1000 = vmatpush.msra.mxu0 %v98
  %1001 = vmatpush.msra.mxu0 %v94
  %1002 = vmatpush.msra.mxu0 %v90
  %1003 = vmatpush.msra.mxu0 %v86
  %1004 = vmatpush.msra.mxu0 %v82
  %1005 = vmatpush.msra.mxu0 %v78
  %1006 = vmatpush.msra.mxu0 %v74
  %1007 = vmatpush.msra.mxu0 %v70
  %1008 = vmatpush.msra.mxu0 %v66
  %1009 = vmatpush.msra.mxu0 %v62
  %1010 = vmatpush.msra.mxu0 %v58
  %1011 = vmatpush.msra.mxu0 %v54
  %1012 = vmatpush.msra.mxu0 %v50
  %1013 = vmatpush.msra.mxu0 %v46
  %1014 = vmatpush.msra.mxu0 %v42
  %1015 = vmatpush.msra.mxu0 %v38
  %1016 = vmatmul.f32.gmra.mxu0 %v958
  %v1017 = vpop.f32.mrf.mxu0
  %v1018 = vadd.f32 0.0, %v1017
  %1019 = vdwg.mxu0
  %1020 = vmatpush.msra.mxu0 %v99
  %1021 = vmatpush.msra.mxu0 %v95
  %1022 = vmatpush.msra.mxu0 %v91
  %1023 = vmatpush.msra.mxu0 %v87
  %1024 = vmatpush.msra.mxu0 %v83
  %1025 = vmatpush.msra.mxu0 %v79
  %1026 = vmatpush.msra.mxu0 %v75
  %1027 = vmatpush.msra.mxu0 %v71
  %1028 = vmatpush.msra.mxu0 %v67
  %1029 = vmatpush.msra.mxu0 %v63
  %1030 = vmatpush.msra.mxu0 %v59
  %1031 = vmatpush.msra.mxu0 %v55
  %1032 = vmatpush.msra.mxu0 %v51
  %1033 = vmatpush.msra.mxu0 %v47
  %1034 = vmatpush.msra.mxu0 %v43
  %1035 = vmatpush.msra.mxu0 %v39
  %1036 = vmatmul.f32.gmra.mxu0 %v958
  %v1037 = vpop.f32.mrf.mxu0
  %v1038 = vadd.f32 0.0, %v1037
  %1039 = vdwg.mxu0
  %v1044 = vrot.slane %v978, 5
  %v1045 = vrot.slane %v998, 5
  %v1046 = vrot.slane %v1018, 5
  %v1047 = vrot.slane %v1038, 5
  %v1048 = vrot.slane %v978, 6
  %v1049 = vrot.slane %v998, 6
  %v1050 = vrot.slane %v1018, 6
  %v1051 = vrot.slane %v1038, 6
  %v1060 = vadd.f32 %v153, %v1044
  %v1061 = vadd.f32 %v176, %v1045
  %v1062 = vadd.f32 %v199, %v1046
  %v1063 = vadd.f32 %v222, %v1047
  %v1064 = vadd.f32 %v156, %v1048
  %v1065 = vadd.f32 %v179, %v1049
  %v1066 = vadd.f32 %v202, %v1050
  %v1067 = vadd.f32 %v225, %v1051
  %v1068 = vxor.u32 %v1060, 2147483648
  %v1069 = vxor.u32 %v1061, 2147483648
  %v1070 = vxor.u32 %v1062, 2147483648
  %v1071 = vxor.u32 %v1064, 2147483648
  %v1072 = vxor.u32 %v1065, 2147483648
  %v1073 = vxor.u32 %v1066, 2147483648
  %v1074 = vmul.f32 %v1068, 1.442695
  %v1075 = vpow.pop %v1074
  %v1076 = vmul.f32 %v1069, 1.442695
  %v1077 = vpow.pop %v1076
  %v1078 = vmul.f32 %v1070, 1.442695
  %v1079 = vpow.pop %v1078
  %v1080 = vmul.f32 %v1071, 1.442695
  %v1081 = vpow.pop %v1080
  %v1082 = vmul.f32 %v1072, 1.442695
  %v1083 = vpow.pop %v1082
  %v1084 = vmul.f32 %v1073, 1.442695
  %v1085 = vpow.pop %v1084
  %v1086 = vadd.f32 %v1075, 1.0
  %v1087 = vadd.f32 %v1077, 1.0
  %v1088 = vadd.f32 %v1079, 1.0
  %v1089 = vadd.f32 %v1081, 1.0
  %v1090 = vadd.f32 %v1083, 1.0
  %v1091 = vadd.f32 %v1085, 1.0
  %v1092 = vrcp.pop %v1086
  %v1093 = vmul.f32 %v1086, %v1092
  %v1094 = vsub.f32 1.0, %v1093
  %v1095 = vmul.f32 %v1092, %v1094
  %v1096 = vadd.f32 %v1092, %v1095
  %vm1097 = vweird.f32 %v1086
  %vm1098 = vweird.f32 %v1092
  %vm1099 = vmor %vm1097, %vm1098
  %v1100 = vsel %vm1099, %v1092, %v1096
  %v1101 = vand.u32 2147483647, %v1086
  %vm1102 = vcmp.eq.f32.partialorder %v1101, 8.507059e+37
  %v1103 = vand.u32 %v1086, 2147483648
  %v1104 = vor.u32 1.1754944e-38, %v1103
  %v1105 = vsel %vm1102, %v1104, %v1100
  %v1106 = vmul.f32 1.0, %v1105
  %v1107 = vrcp.pop %v1087
  %v1108 = vmul.f32 %v1087, %v1107
  %v1109 = vsub.f32 1.0, %v1108
  %v1110 = vmul.f32 %v1107, %v1109
  %v1111 = vadd.f32 %v1107, %v1110
  %vm1112 = vweird.f32 %v1087
  %vm1113 = vweird.f32 %v1107
  %vm1114 = vmor %vm1112, %vm1113
  %v1115 = vsel %vm1114, %v1107, %v1111
  %v1116 = vand.u32 2147483647, %v1087
  %vm1117 = vcmp.eq.f32.partialorder %v1116, 8.507059e+37
  %v1118 = vand.u32 %v1087, 2147483648
  %v1119 = vor.u32 1.1754944e-38, %v1118
  %v1120 = vsel %vm1117, %v1119, %v1115
  %v1121 = vmul.f32 1.0, %v1120
  %v1122 = vrcp.pop %v1088
  %v1123 = vmul.f32 %v1088, %v1122
  %v1124 = vsub.f32 1.0, %v1123
  %v1125 = vmul.f32 %v1122, %v1124
  %v1126 = vadd.f32 %v1122, %v1125
  %vm1127 = vweird.f32 %v1088
  %vm1128 = vweird.f32 %v1122
  %vm1129 = vmor %vm1127, %vm1128
  %v1130 = vsel %vm1129, %v1122, %v1126
  %v1131 = vand.u32 2147483647, %v1088
  %vm1132 = vcmp.eq.f32.partialorder %v1131, 8.507059e+37
  %v1133 = vand.u32 %v1088, 2147483648
  %v1134 = vor.u32 1.1754944e-38, %v1133
  %v1135 = vsel %vm1132, %v1134, %v1130
  %v1136 = vmul.f32 1.0, %v1135
  %v1137 = vrcp.pop %v1089
  %v1138 = vmul.f32 %v1089, %v1137
  %v1139 = vsub.f32 1.0, %v1138
  %v1140 = vmul.f32 %v1137, %v1139
  %v1141 = vadd.f32 %v1137, %v1140
  %vm1142 = vweird.f32 %v1089
  %vm1143 = vweird.f32 %v1137
  %vm1144 = vmor %vm1142, %vm1143
  %v1145 = vsel %vm1144, %v1137, %v1141
  %v1146 = vand.u32 2147483647, %v1089
  %vm1147 = vcmp.eq.f32.partialorder %v1146, 8.507059e+37
  %v1148 = vand.u32 %v1089, 2147483648
  %v1149 = vor.u32 1.1754944e-38, %v1148
  %v1150 = vsel %vm1147, %v1149, %v1145
  %v1151 = vmul.f32 1.0, %v1150
  %v1152 = vrcp.pop %v1090
  %v1153 = vmul.f32 %v1090, %v1152
  %v1154 = vsub.f32 1.0, %v1153
  %v1155 = vmul.f32 %v1152, %v1154
  %v1156 = vadd.f32 %v1152, %v1155
  %vm1157 = vweird.f32 %v1090
  %vm1158 = vweird.f32 %v1152
  %vm1159 = vmor %vm1157, %vm1158
  %v1160 = vsel %vm1159, %v1152, %v1156
  %v1161 = vand.u32 2147483647, %v1090
  %vm1162 = vcmp.eq.f32.partialorder %v1161, 8.507059e+37
  %v1163 = vand.u32 %v1090, 2147483648
  %v1164 = vor.u32 1.1754944e-38, %v1163
  %v1165 = vsel %vm1162, %v1164, %v1160
  %v1166 = vmul.f32 1.0, %v1165
  %v1167 = vrcp.pop %v1091
  %v1168 = vmul.f32 %v1091, %v1167
  %v1169 = vsub.f32 1.0, %v1168
  %v1170 = vmul.f32 %v1167, %v1169
  %v1171 = vadd.f32 %v1167, %v1170
  %vm1172 = vweird.f32 %v1091
  %vm1173 = vweird.f32 %v1167
  %vm1174 = vmor %vm1172, %vm1173
  %v1175 = vsel %vm1174, %v1167, %v1171
  %v1176 = vand.u32 2147483647, %v1091
  %vm1177 = vcmp.eq.f32.partialorder %v1176, 8.507059e+37
  %v1178 = vand.u32 %v1091, 2147483648
  %v1179 = vor.u32 1.1754944e-38, %v1178
  %v1180 = vsel %vm1177, %v1179, %v1175
  %v1181 = vmul.f32 1.0, %v1180
  %v1182 = vtanh.pop %v1063
  %v1183 = vtanh.pop %v1067
  %v1186 = vrot.slane %v946, 7
  %v1187 = vrot.slane %v947, 7
  %v1190 = vmul.f32 %v1121, %v1186
  %v1191 = vmul.f32 %v1166, %v1187
  %v1192 = vmul.f32 %v1106, %v1182
  %v1193 = vmul.f32 %v1151, %v1183
  %v1194 = vadd.f32 %v1190, %v1192
  %v1195 = vadd.f32 %v1191, %v1193
  %v1196 = vtanh.pop %v1194
  %v1197 = vtanh.pop %v1195
  %v1198 = vmul.f32 %v1136, %v1196
  %v1199 = vmul.f32 %v1181, %v1197
  %1200 = vst [vmem:[%s6] sm:$0x8] %v1198
  %1201 = vst [vmem:[%s6 + $0x8] sm:$0x8] %v1199
  %v1204 = vrot.slane %v1198, 3
  %v1205 = vrot.slane %v1199, 2
  %v1206 = vsel %vm466, %v1205, %v1204
  %1208 = vmatpush.msra.mxu0 %v96
  %1209 = vmatpush.msra.mxu0 %v92
  %1210 = vmatpush.msra.mxu0 %v88
  %1211 = vmatpush.msra.mxu0 %v84
  %1212 = vmatpush.msra.mxu0 %v80
  %1213 = vmatpush.msra.mxu0 %v76
  %1214 = vmatpush.msra.mxu0 %v72
  %1215 = vmatpush.msra.mxu0 %v68
  %1216 = vmatpush.msra.mxu0 %v64
  %1217 = vmatpush.msra.mxu0 %v60
  %1218 = vmatpush.msra.mxu0 %v56
  %1219 = vmatpush.msra.mxu0 %v52
  %1220 = vmatpush.msra.mxu0 %v48
  %1221 = vmatpush.msra.mxu0 %v44
  %1222 = vmatpush.msra.mxu0 %v40
  %1223 = vmatpush.msra.mxu0 %v36
  %1224 = vmatmul.f32.gmra.mxu0 %v1206
  %v1225 = vpop.f32.mrf.mxu0
  %v1226 = vadd.f32 0.0, %v1225
  %1227 = vdwg.mxu0
  %1228 = vmatpush.msra.mxu0 %v97
  %1229 = vmatpush.msra.mxu0 %v93
  %1230 = vmatpush.msra.mxu0 %v89
  %1231 = vmatpush.msra.mxu0 %v85
  %1232 = vmatpush.msra.mxu0 %v81
  %1233 = vmatpush.msra.mxu0 %v77
  %1234 = vmatpush.msra.mxu0 %v73
  %1235 = vmatpush.msra.mxu0 %v69
  %1236 = vmatpush.msra.mxu0 %v65
  %1237 = vmatpush.msra.mxu0 %v61
  %1238 = vmatpush.msra.mxu0 %v57
  %1239 = vmatpush.msra.mxu0 %v53
  %1240 = vmatpush.msra.mxu0 %v49
  %1241 = vmatpush.msra.mxu0 %v45
  %1242 = vmatpush.msra.mxu0 %v41
  %1243 = vmatpush.msra.mxu0 %v37
  %1244 = vmatmul.f32.gmra.mxu0 %v1206
  %v1245 = vpop.f32.mrf.mxu0
  %v1246 = vadd.f32 0.0, %v1245
  %1247 = vdwg.mxu0
  %1248 = vmatpush.msra.mxu0 %v98
  %1249 = vmatpush.msra.mxu0 %v94
  %1250 = vmatpush.msra.mxu0 %v90
  %1251 = vmatpush.msra.mxu0 %v86
  %1252 = vmatpush.msra.mxu0 %v82
  %1253 = vmatpush.msra.mxu0 %v78
  %1254 = vmatpush.msra.mxu0 %v74
  %1255 = vmatpush.msra.mxu0 %v70
  %1256 = vmatpush.msra.mxu0 %v66
  %1257 = vmatpush.msra.mxu0 %v62
  %1258 = vmatpush.msra.mxu0 %v58
  %1259 = vmatpush.msra.mxu0 %v54
  %1260 = vmatpush.msra.mxu0 %v50
  %1261 = vmatpush.msra.mxu0 %v46
  %1262 = vmatpush.msra.mxu0 %v42
  %1263 = vmatpush.msra.mxu0 %v38
  %1264 = vmatmul.f32.gmra.mxu0 %v1206
  %v1265 = vpop.f32.mrf.mxu0
  %v1266 = vadd.f32 0.0, %v1265
  %1267 = vdwg.mxu0
  %1268 = vmatpush.msra.mxu0 %v99
  %1269 = vmatpush.msra.mxu0 %v95
  %1270 = vmatpush.msra.mxu0 %v91
  %1271 = vmatpush.msra.mxu0 %v87
  %1272 = vmatpush.msra.mxu0 %v83
  %1273 = vmatpush.msra.mxu0 %v79
  %1274 = vmatpush.msra.mxu0 %v75
  %1275 = vmatpush.msra.mxu0 %v71
  %1276 = vmatpush.msra.mxu0 %v67
  %1277 = vmatpush.msra.mxu0 %v63
  %1278 = vmatpush.msra.mxu0 %v59
  %1279 = vmatpush.msra.mxu0 %v55
  %1280 = vmatpush.msra.mxu0 %v51
  %1281 = vmatpush.msra.mxu0 %v47
  %1282 = vmatpush.msra.mxu0 %v43
  %1283 = vmatpush.msra.mxu0 %v39
  %1284 = vmatmul.f32.gmra.mxu0 %v1206
  %v1285 = vpop.f32.mrf.mxu0
  %v1286 = vadd.f32 0.0, %v1285
  %1287 = vdwg.mxu0
  %v1292 = vrot.slane %v1226, 4
  %v1293 = vrot.slane %v1246, 4
  %v1294 = vrot.slane %v1266, 4
  %v1295 = vrot.slane %v1286, 4
  %v1296 = vrot.slane %v1226, 5
  %v1297 = vrot.slane %v1246, 5
  %v1298 = vrot.slane %v1266, 5
  %v1299 = vrot.slane %v1286, 5
  %v1308 = vadd.f32 %v153, %v1292
  %v1309 = vadd.f32 %v176, %v1293
  %v1310 = vadd.f32 %v199, %v1294
  %v1311 = vadd.f32 %v222, %v1295
  %v1312 = vadd.f32 %v156, %v1296
  %v1313 = vadd.f32 %v179, %v1297
  %v1314 = vadd.f32 %v202, %v1298
  %v1315 = vadd.f32 %v225, %v1299
  %v1316 = vxor.u32 %v1308, 2147483648
  %v1317 = vxor.u32 %v1309, 2147483648
  %v1318 = vxor.u32 %v1310, 2147483648
  %v1319 = vxor.u32 %v1312, 2147483648
  %v1320 = vxor.u32 %v1313, 2147483648
  %v1321 = vxor.u32 %v1314, 2147483648
  %v1322 = vmul.f32 %v1316, 1.442695
  %v1323 = vpow.pop %v1322
  %v1324 = vmul.f32 %v1317, 1.442695
  %v1325 = vpow.pop %v1324
  %v1326 = vmul.f32 %v1318, 1.442695
  %v1327 = vpow.pop %v1326
  %v1328 = vmul.f32 %v1319, 1.442695
  %v1329 = vpow.pop %v1328
  %v1330 = vmul.f32 %v1320, 1.442695
  %v1331 = vpow.pop %v1330
  %v1332 = vmul.f32 %v1321, 1.442695
  %v1333 = vpow.pop %v1332
  %v1334 = vadd.f32 %v1323, 1.0
  %v1335 = vadd.f32 %v1325, 1.0
  %v1336 = vadd.f32 %v1327, 1.0
  %v1337 = vadd.f32 %v1329, 1.0
  %v1338 = vadd.f32 %v1331, 1.0
  %v1339 = vadd.f32 %v1333, 1.0
  %v1340 = vrcp.pop %v1334
  %v1341 = vmul.f32 %v1334, %v1340
  %v1342 = vsub.f32 1.0, %v1341
  %v1343 = vmul.f32 %v1340, %v1342
  %v1344 = vadd.f32 %v1340, %v1343
  %vm1345 = vweird.f32 %v1334
  %vm1346 = vweird.f32 %v1340
  %vm1347 = vmor %vm1345, %vm1346
  %v1348 = vsel %vm1347, %v1340, %v1344
  %v1349 = vand.u32 2147483647, %v1334
  %vm1350 = vcmp.eq.f32.partialorder %v1349, 8.507059e+37
  %v1351 = vand.u32 %v1334, 2147483648
  %v1352 = vor.u32 1.1754944e-38, %v1351
  %v1353 = vsel %vm1350, %v1352, %v1348
  %v1354 = vmul.f32 1.0, %v1353
  %v1355 = vrcp.pop %v1335
  %v1356 = vmul.f32 %v1335, %v1355
  %v1357 = vsub.f32 1.0, %v1356
  %v1358 = vmul.f32 %v1355, %v1357
  %v1359 = vadd.f32 %v1355, %v1358
  %vm1360 = vweird.f32 %v1335
  %vm1361 = vweird.f32 %v1355
  %vm1362 = vmor %vm1360, %vm1361
  %v1363 = vsel %vm1362, %v1355, %v1359
  %v1364 = vand.u32 2147483647, %v1335
  %vm1365 = vcmp.eq.f32.partialorder %v1364, 8.507059e+37
  %v1366 = vand.u32 %v1335, 2147483648
  %v1367 = vor.u32 1.1754944e-38, %v1366
  %v1368 = vsel %vm1365, %v1367, %v1363
  %v1369 = vmul.f32 1.0, %v1368
  %v1370 = vrcp.pop %v1336
  %v1371 = vmul.f32 %v1336, %v1370
  %v1372 = vsub.f32 1.0, %v1371
  %v1373 = vmul.f32 %v1370, %v1372
  %v1374 = vadd.f32 %v1370, %v1373
  %vm1375 = vweird.f32 %v1336
  %vm1376 = vweird.f32 %v1370
  %vm1377 = vmor %vm1375, %vm1376
  %v1378 = vsel %vm1377, %v1370, %v1374
  %v1379 = vand.u32 2147483647, %v1336
  %vm1380 = vcmp.eq.f32.partialorder %v1379, 8.507059e+37
  %v1381 = vand.u32 %v1336, 2147483648
  %v1382 = vor.u32 1.1754944e-38, %v1381
  %v1383 = vsel %vm1380, %v1382, %v1378
  %v1384 = vmul.f32 1.0, %v1383
  %v1385 = vrcp.pop %v1337
  %v1386 = vmul.f32 %v1337, %v1385
  %v1387 = vsub.f32 1.0, %v1386
  %v1388 = vmul.f32 %v1385, %v1387
  %v1389 = vadd.f32 %v1385, %v1388
  %vm1390 = vweird.f32 %v1337
  %vm1391 = vweird.f32 %v1385
  %vm1392 = vmor %vm1390, %vm1391
  %v1393 = vsel %vm1392, %v1385, %v1389
  %v1394 = vand.u32 2147483647, %v1337
  %vm1395 = vcmp.eq.f32.partialorder %v1394, 8.507059e+37
  %v1396 = vand.u32 %v1337, 2147483648
  %v1397 = vor.u32 1.1754944e-38, %v1396
  %v1398 = vsel %vm1395, %v1397, %v1393
  %v1399 = vmul.f32 1.0, %v1398
  %v1400 = vrcp.pop %v1338
  %v1401 = vmul.f32 %v1338, %v1400
  %v1402 = vsub.f32 1.0, %v1401
  %v1403 = vmul.f32 %v1400, %v1402
  %v1404 = vadd.f32 %v1400, %v1403
  %vm1405 = vweird.f32 %v1338
  %vm1406 = vweird.f32 %v1400
  %vm1407 = vmor %vm1405, %vm1406
  %v1408 = vsel %vm1407, %v1400, %v1404
  %v1409 = vand.u32 2147483647, %v1338
  %vm1410 = vcmp.eq.f32.partialorder %v1409, 8.507059e+37
  %v1411 = vand.u32 %v1338, 2147483648
  %v1412 = vor.u32 1.1754944e-38, %v1411
  %v1413 = vsel %vm1410, %v1412, %v1408
  %v1414 = vmul.f32 1.0, %v1413
  %v1415 = vrcp.pop %v1339
  %v1416 = vmul.f32 %v1339, %v1415
  %v1417 = vsub.f32 1.0, %v1416
  %v1418 = vmul.f32 %v1415, %v1417
  %v1419 = vadd.f32 %v1415, %v1418
  %vm1420 = vweird.f32 %v1339
  %vm1421 = vweird.f32 %v1415
  %vm1422 = vmor %vm1420, %vm1421
  %v1423 = vsel %vm1422, %v1415, %v1419
  %v1424 = vand.u32 2147483647, %v1339
  %vm1425 = vcmp.eq.f32.partialorder %v1424, 8.507059e+37
  %v1426 = vand.u32 %v1339, 2147483648
  %v1427 = vor.u32 1.1754944e-38, %v1426
  %v1428 = vsel %vm1425, %v1427, %v1423
  %v1429 = vmul.f32 1.0, %v1428
  %v1430 = vtanh.pop %v1311
  %v1431 = vtanh.pop %v1315
  %v1434 = vrot.slane %v1194, 7
  %v1435 = vrot.slane %v1195, 7
  %v1438 = vmul.f32 %v1369, %v1434
  %v1439 = vmul.f32 %v1414, %v1435
  %v1440 = vmul.f32 %v1354, %v1430
  %v1441 = vmul.f32 %v1399, %v1431
  %v1442 = vadd.f32 %v1438, %v1440
  %v1443 = vadd.f32 %v1439, %v1441
  %v1444 = vtanh.pop %v1442
  %v1445 = vtanh.pop %v1443
  %v1446 = vmul.f32 %v1384, %v1444
  %v1447 = vmul.f32 %v1429, %v1445
  %1448 = vst [vmem:[%s6] sm:$0x10] %v1446
  %1449 = vst [vmem:[%s6 + $0x8] sm:$0x10] %v1447
  %v1452 = vrot.slane %v1446, 4
  %v1453 = vrot.slane %v1447, 3
  %v1454 = vsel %vm466, %v1453, %v1452
  %1456 = vmatpush.msra.mxu0 %v96
  %1457 = vmatpush.msra.mxu0 %v92
  %1458 = vmatpush.msra.mxu0 %v88
  %1459 = vmatpush.msra.mxu0 %v84
  %1460 = vmatpush.msra.mxu0 %v80
  %1461 = vmatpush.msra.mxu0 %v76
  %1462 = vmatpush.msra.mxu0 %v72
  %1463 = vmatpush.msra.mxu0 %v68
  %1464 = vmatpush.msra.mxu0 %v64
  %1465 = vmatpush.msra.mxu0 %v60
  %1466 = vmatpush.msra.mxu0 %v56
  %1467 = vmatpush.msra.mxu0 %v52
  %1468 = vmatpush.msra.mxu0 %v48
  %1469 = vmatpush.msra.mxu0 %v44
  %1470 = vmatpush.msra.mxu0 %v40
  %1471 = vmatpush.msra.mxu0 %v36
  %1472 = vmatmul.f32.gmra.mxu0 %v1454
  %v1473 = vpop.f32.mrf.mxu0
  %v1474 = vadd.f32 0.0, %v1473
  %1475 = vdwg.mxu0
  %1476 = vmatpush.msra.mxu0 %v97
  %1477 = vmatpush.msra.mxu0 %v93
  %1478 = vmatpush.msra.mxu0 %v89
  %1479 = vmatpush.msra.mxu0 %v85
  %1480 = vmatpush.msra.mxu0 %v81
  %1481 = vmatpush.msra.mxu0 %v77
  %1482 = vmatpush.msra.mxu0 %v73
  %1483 = vmatpush.msra.mxu0 %v69
  %1484 = vmatpush.msra.mxu0 %v65
  %1485 = vmatpush.msra.mxu0 %v61
  %1486 = vmatpush.msra.mxu0 %v57
  %1487 = vmatpush.msra.mxu0 %v53
  %1488 = vmatpush.msra.mxu0 %v49
  %1489 = vmatpush.msra.mxu0 %v45
  %1490 = vmatpush.msra.mxu0 %v41
  %1491 = vmatpush.msra.mxu0 %v37
  %1492 = vmatmul.f32.gmra.mxu0 %v1454
  %v1493 = vpop.f32.mrf.mxu0
  %v1494 = vadd.f32 0.0, %v1493
  %1495 = vdwg.mxu0
  %1496 = vmatpush.msra.mxu0 %v98
  %1497 = vmatpush.msra.mxu0 %v94
  %1498 = vmatpush.msra.mxu0 %v90
  %1499 = vmatpush.msra.mxu0 %v86
  %1500 = vmatpush.msra.mxu0 %v82
  %1501 = vmatpush.msra.mxu0 %v78
  %1502 = vmatpush.msra.mxu0 %v74
  %1503 = vmatpush.msra.mxu0 %v70
  %1504 = vmatpush.msra.mxu0 %v66
  %1505 = vmatpush.msra.mxu0 %v62
  %1506 = vmatpush.msra.mxu0 %v58
  %1507 = vmatpush.msra.mxu0 %v54
  %1508 = vmatpush.msra.mxu0 %v50
  %1509 = vmatpush.msra.mxu0 %v46
  %1510 = vmatpush.msra.mxu0 %v42
  %1511 = vmatpush.msra.mxu0 %v38
  %1512 = vmatmul.f32.gmra.mxu0 %v1454
  %v1513 = vpop.f32.mrf.mxu0
  %v1514 = vadd.f32 0.0, %v1513
  %1515 = vdwg.mxu0
  %1516 = vmatpush.msra.mxu0 %v99
  %1517 = vmatpush.msra.mxu0 %v95
  %1518 = vmatpush.msra.mxu0 %v91
  %1519 = vmatpush.msra.mxu0 %v87
  %1520 = vmatpush.msra.mxu0 %v83
  %1521 = vmatpush.msra.mxu0 %v79
  %1522 = vmatpush.msra.mxu0 %v75
  %1523 = vmatpush.msra.mxu0 %v71
  %1524 = vmatpush.msra.mxu0 %v67
  %1525 = vmatpush.msra.mxu0 %v63
  %1526 = vmatpush.msra.mxu0 %v59
  %1527 = vmatpush.msra.mxu0 %v55
  %1528 = vmatpush.msra.mxu0 %v51
  %1529 = vmatpush.msra.mxu0 %v47
  %1530 = vmatpush.msra.mxu0 %v43
  %1531 = vmatpush.msra.mxu0 %v39
  %1532 = vmatmul.f32.gmra.mxu0 %v1454
  %v1533 = vpop.f32.mrf.mxu0
  %v1534 = vadd.f32 0.0, %v1533
  %1535 = vdwg.mxu0
  %v1540 = vrot.slane %v1474, 3
  %v1541 = vrot.slane %v1494, 3
  %v1542 = vrot.slane %v1514, 3
  %v1543 = vrot.slane %v1534, 3
  %v1544 = vrot.slane %v1474, 4
  %v1545 = vrot.slane %v1494, 4
  %v1546 = vrot.slane %v1514, 4
  %v1547 = vrot.slane %v1534, 4
  %v1556 = vadd.f32 %v153, %v1540
  %v1557 = vadd.f32 %v176, %v1541
  %v1558 = vadd.f32 %v199, %v1542
  %v1559 = vadd.f32 %v222, %v1543
  %v1560 = vadd.f32 %v156, %v1544
  %v1561 = vadd.f32 %v179, %v1545
  %v1562 = vadd.f32 %v202, %v1546
  %v1563 = vadd.f32 %v225, %v1547
  %v1564 = vxor.u32 %v1556, 2147483648
  %v1565 = vxor.u32 %v1557, 2147483648
  %v1566 = vxor.u32 %v1558, 2147483648
  %v1567 = vxor.u32 %v1560, 2147483648
  %v1568 = vxor.u32 %v1561, 2147483648
  %v1569 = vxor.u32 %v1562, 2147483648
  %v1570 = vmul.f32 %v1564, 1.442695
  %v1571 = vpow.pop %v1570
  %v1572 = vmul.f32 %v1565, 1.442695
  %v1573 = vpow.pop %v1572
  %v1574 = vmul.f32 %v1566, 1.442695
  %v1575 = vpow.pop %v1574
  %v1576 = vmul.f32 %v1567, 1.442695
  %v1577 = vpow.pop %v1576
  %v1578 = vmul.f32 %v1568, 1.442695
  %v1579 = vpow.pop %v1578
  %v1580 = vmul.f32 %v1569, 1.442695
  %v1581 = vpow.pop %v1580
  %v1582 = vadd.f32 %v1571, 1.0
  %v1583 = vadd.f32 %v1573, 1.0
  %v1584 = vadd.f32 %v1575, 1.0
  %v1585 = vadd.f32 %v1577, 1.0
  %v1586 = vadd.f32 %v1579, 1.0
  %v1587 = vadd.f32 %v1581, 1.0
  %v1588 = vrcp.pop %v1582
  %v1589 = vmul.f32 %v1582, %v1588
  %v1590 = vsub.f32 1.0, %v1589
  %v1591 = vmul.f32 %v1588, %v1590
  %v1592 = vadd.f32 %v1588, %v1591
  %vm1593 = vweird.f32 %v1582
  %vm1594 = vweird.f32 %v1588
  %vm1595 = vmor %vm1593, %vm1594
  %v1596 = vsel %vm1595, %v1588, %v1592
  %v1597 = vand.u32 2147483647, %v1582
  %vm1598 = vcmp.eq.f32.partialorder %v1597, 8.507059e+37
  %v1599 = vand.u32 %v1582, 2147483648
  %v1600 = vor.u32 1.1754944e-38, %v1599
  %v1601 = vsel %vm1598, %v1600, %v1596
  %v1602 = vmul.f32 1.0, %v1601
  %v1603 = vrcp.pop %v1583
  %v1604 = vmul.f32 %v1583, %v1603
  %v1605 = vsub.f32 1.0, %v1604
  %v1606 = vmul.f32 %v1603, %v1605
  %v1607 = vadd.f32 %v1603, %v1606
  %vm1608 = vweird.f32 %v1583
  %vm1609 = vweird.f32 %v1603
  %vm1610 = vmor %vm1608, %vm1609
  %v1611 = vsel %vm1610, %v1603, %v1607
  %v1612 = vand.u32 2147483647, %v1583
  %vm1613 = vcmp.eq.f32.partialorder %v1612, 8.507059e+37
  %v1614 = vand.u32 %v1583, 2147483648
  %v1615 = vor.u32 1.1754944e-38, %v1614
  %v1616 = vsel %vm1613, %v1615, %v1611
  %v1617 = vmul.f32 1.0, %v1616
  %v1618 = vrcp.pop %v1584
  %v1619 = vmul.f32 %v1584, %v1618
  %v1620 = vsub.f32 1.0, %v1619
  %v1621 = vmul.f32 %v1618, %v1620
  %v1622 = vadd.f32 %v1618, %v1621
  %vm1623 = vweird.f32 %v1584
  %vm1624 = vweird.f32 %v1618
  %vm1625 = vmor %vm1623, %vm1624
  %v1626 = vsel %vm1625, %v1618, %v1622
  %v1627 = vand.u32 2147483647, %v1584
  %vm1628 = vcmp.eq.f32.partialorder %v1627, 8.507059e+37
  %v1629 = vand.u32 %v1584, 2147483648
  %v1630 = vor.u32 1.1754944e-38, %v1629
  %v1631 = vsel %vm1628, %v1630, %v1626
  %v1632 = vmul.f32 1.0, %v1631
  %v1633 = vrcp.pop %v1585
  %v1634 = vmul.f32 %v1585, %v1633
  %v1635 = vsub.f32 1.0, %v1634
  %v1636 = vmul.f32 %v1633, %v1635
  %v1637 = vadd.f32 %v1633, %v1636
  %vm1638 = vweird.f32 %v1585
  %vm1639 = vweird.f32 %v1633
  %vm1640 = vmor %vm1638, %vm1639
  %v1641 = vsel %vm1640, %v1633, %v1637
  %v1642 = vand.u32 2147483647, %v1585
  %vm1643 = vcmp.eq.f32.partialorder %v1642, 8.507059e+37
  %v1644 = vand.u32 %v1585, 2147483648
  %v1645 = vor.u32 1.1754944e-38, %v1644
  %v1646 = vsel %vm1643, %v1645, %v1641
  %v1647 = vmul.f32 1.0, %v1646
  %v1648 = vrcp.pop %v1586
  %v1649 = vmul.f32 %v1586, %v1648
  %v1650 = vsub.f32 1.0, %v1649
  %v1651 = vmul.f32 %v1648, %v1650
  %v1652 = vadd.f32 %v1648, %v1651
  %vm1653 = vweird.f32 %v1586
  %vm1654 = vweird.f32 %v1648
  %vm1655 = vmor %vm1653, %vm1654
  %v1656 = vsel %vm1655, %v1648, %v1652
  %v1657 = vand.u32 2147483647, %v1586
  %vm1658 = vcmp.eq.f32.partialorder %v1657, 8.507059e+37
  %v1659 = vand.u32 %v1586, 2147483648
  %v1660 = vor.u32 1.1754944e-38, %v1659
  %v1661 = vsel %vm1658, %v1660, %v1656
  %v1662 = vmul.f32 1.0, %v1661
  %v1663 = vrcp.pop %v1587
  %v1664 = vmul.f32 %v1587, %v1663
  %v1665 = vsub.f32 1.0, %v1664
  %v1666 = vmul.f32 %v1663, %v1665
  %v1667 = vadd.f32 %v1663, %v1666
  %vm1668 = vweird.f32 %v1587
  %vm1669 = vweird.f32 %v1663
  %vm1670 = vmor %vm1668, %vm1669
  %v1671 = vsel %vm1670, %v1663, %v1667
  %v1672 = vand.u32 2147483647, %v1587
  %vm1673 = vcmp.eq.f32.partialorder %v1672, 8.507059e+37
  %v1674 = vand.u32 %v1587, 2147483648
  %v1675 = vor.u32 1.1754944e-38, %v1674
  %v1676 = vsel %vm1673, %v1675, %v1671
  %v1677 = vmul.f32 1.0, %v1676
  %v1678 = vtanh.pop %v1559
  %v1679 = vtanh.pop %v1563
  %v1682 = vrot.slane %v1442, 7
  %v1683 = vrot.slane %v1443, 7
  %v1686 = vmul.f32 %v1617, %v1682
  %v1687 = vmul.f32 %v1662, %v1683
  %v1688 = vmul.f32 %v1602, %v1678
  %v1689 = vmul.f32 %v1647, %v1679
  %v1690 = vadd.f32 %v1686, %v1688
  %v1691 = vadd.f32 %v1687, %v1689
  %v1692 = vtanh.pop %v1690
  %v1693 = vtanh.pop %v1691
  %v1694 = vmul.f32 %v1632, %v1692
  %v1695 = vmul.f32 %v1677, %v1693
  %1696 = vst [vmem:[%s6] sm:$0x20] %v1694
  %1697 = vst [vmem:[%s6 + $0x8] sm:$0x20] %v1695
  %v1700 = vrot.slane %v1694, 5
  %v1701 = vrot.slane %v1695, 4
  %v1702 = vsel %vm466, %v1701, %v1700
  %1704 = vmatpush.msra.mxu0 %v96
  %1705 = vmatpush.msra.mxu0 %v92
  %1706 = vmatpush.msra.mxu0 %v88
  %1707 = vmatpush.msra.mxu0 %v84
  %1708 = vmatpush.msra.mxu0 %v80
  %1709 = vmatpush.msra.mxu0 %v76
  %1710 = vmatpush.msra.mxu0 %v72
  %1711 = vmatpush.msra.mxu0 %v68
  %1712 = vmatpush.msra.mxu0 %v64
  %1713 = vmatpush.msra.mxu0 %v60
  %1714 = vmatpush.msra.mxu0 %v56
  %1715 = vmatpush.msra.mxu0 %v52
  %1716 = vmatpush.msra.mxu0 %v48
  %1717 = vmatpush.msra.mxu0 %v44
  %1718 = vmatpush.msra.mxu0 %v40
  %1719 = vmatpush.msra.mxu0 %v36
  %1720 = vmatmul.f32.gmra.mxu0 %v1702
  %v1721 = vpop.f32.mrf.mxu0
  %v1722 = vadd.f32 0.0, %v1721
  %1723 = vdwg.mxu0
  %1724 = vmatpush.msra.mxu0 %v97
  %1725 = vmatpush.msra.mxu0 %v93
  %1726 = vmatpush.msra.mxu0 %v89
  %1727 = vmatpush.msra.mxu0 %v85
  %1728 = vmatpush.msra.mxu0 %v81
  %1729 = vmatpush.msra.mxu0 %v77
  %1730 = vmatpush.msra.mxu0 %v73
  %1731 = vmatpush.msra.mxu0 %v69
  %1732 = vmatpush.msra.mxu0 %v65
  %1733 = vmatpush.msra.mxu0 %v61
  %1734 = vmatpush.msra.mxu0 %v57
  %1735 = vmatpush.msra.mxu0 %v53
  %1736 = vmatpush.msra.mxu0 %v49
  %1737 = vmatpush.msra.mxu0 %v45
  %1738 = vmatpush.msra.mxu0 %v41
  %1739 = vmatpush.msra.mxu0 %v37
  %1740 = vmatmul.f32.gmra.mxu0 %v1702
  %v1741 = vpop.f32.mrf.mxu0
  %v1742 = vadd.f32 0.0, %v1741
  %1743 = vdwg.mxu0
  %1744 = vmatpush.msra.mxu0 %v98
  %1745 = vmatpush.msra.mxu0 %v94
  %1746 = vmatpush.msra.mxu0 %v90
  %1747 = vmatpush.msra.mxu0 %v86
  %1748 = vmatpush.msra.mxu0 %v82
  %1749 = vmatpush.msra.mxu0 %v78
  %1750 = vmatpush.msra.mxu0 %v74
  %1751 = vmatpush.msra.mxu0 %v70
  %1752 = vmatpush.msra.mxu0 %v66
  %1753 = vmatpush.msra.mxu0 %v62
  %1754 = vmatpush.msra.mxu0 %v58
  %1755 = vmatpush.msra.mxu0 %v54
  %1756 = vmatpush.msra.mxu0 %v50
  %1757 = vmatpush.msra.mxu0 %v46
  %1758 = vmatpush.msra.mxu0 %v42
  %1759 = vmatpush.msra.mxu0 %v38
  %1760 = vmatmul.f32.gmra.mxu0 %v1702
  %v1761 = vpop.f32.mrf.mxu0
  %v1762 = vadd.f32 0.0, %v1761
  %1763 = vdwg.mxu0
  %1764 = vmatpush.msra.mxu0 %v99
  %1765 = vmatpush.msra.mxu0 %v95
  %1766 = vmatpush.msra.mxu0 %v91
  %1767 = vmatpush.msra.mxu0 %v87
  %1768 = vmatpush.msra.mxu0 %v83
  %1769 = vmatpush.msra.mxu0 %v79
  %1770 = vmatpush.msra.mxu0 %v75
  %1771 = vmatpush.msra.mxu0 %v71
  %1772 = vmatpush.msra.mxu0 %v67
  %1773 = vmatpush.msra.mxu0 %v63
  %1774 = vmatpush.msra.mxu0 %v59
  %1775 = vmatpush.msra.mxu0 %v55
  %1776 = vmatpush.msra.mxu0 %v51
  %1777 = vmatpush.msra.mxu0 %v47
  %1778 = vmatpush.msra.mxu0 %v43
  %1779 = vmatpush.msra.mxu0 %v39
  %1780 = vmatmul.f32.gmra.mxu0 %v1702
  %v1781 = vpop.f32.mrf.mxu0
  %v1782 = vadd.f32 0.0, %v1781
  %1783 = vdwg.mxu0
  %v1788 = vrot.slane %v1722, 2
  %v1789 = vrot.slane %v1742, 2
  %v1790 = vrot.slane %v1762, 2
  %v1791 = vrot.slane %v1782, 2
  %v1792 = vrot.slane %v1722, 3
  %v1793 = vrot.slane %v1742, 3
  %v1794 = vrot.slane %v1762, 3
  %v1795 = vrot.slane %v1782, 3
  %v1804 = vadd.f32 %v153, %v1788
  %v1805 = vadd.f32 %v176, %v1789
  %v1806 = vadd.f32 %v199, %v1790
  %v1807 = vadd.f32 %v222, %v1791
  %v1808 = vadd.f32 %v156, %v1792
  %v1809 = vadd.f32 %v179, %v1793
  %v1810 = vadd.f32 %v202, %v1794
  %v1811 = vadd.f32 %v225, %v1795
  %v1812 = vxor.u32 %v1804, 2147483648
  %v1813 = vxor.u32 %v1805, 2147483648
  %v1814 = vxor.u32 %v1806, 2147483648
  %v1815 = vxor.u32 %v1808, 2147483648
  %v1816 = vxor.u32 %v1809, 2147483648
  %v1817 = vxor.u32 %v1810, 2147483648
  %v1818 = vmul.f32 %v1812, 1.442695
  %v1819 = vpow.pop %v1818
  %v1820 = vmul.f32 %v1813, 1.442695
  %v1821 = vpow.pop %v1820
  %v1822 = vmul.f32 %v1814, 1.442695
  %v1823 = vpow.pop %v1822
  %v1824 = vmul.f32 %v1815, 1.442695
  %v1825 = vpow.pop %v1824
  %v1826 = vmul.f32 %v1816, 1.442695
  %v1827 = vpow.pop %v1826
  %v1828 = vmul.f32 %v1817, 1.442695
  %v1829 = vpow.pop %v1828
  %v1830 = vadd.f32 %v1819, 1.0
  %v1831 = vadd.f32 %v1821, 1.0
  %v1832 = vadd.f32 %v1823, 1.0
  %v1833 = vadd.f32 %v1825, 1.0
  %v1834 = vadd.f32 %v1827, 1.0
  %v1835 = vadd.f32 %v1829, 1.0
  %v1836 = vrcp.pop %v1830
  %v1837 = vmul.f32 %v1830, %v1836
  %v1838 = vsub.f32 1.0, %v1837
  %v1839 = vmul.f32 %v1836, %v1838
  %v1840 = vadd.f32 %v1836, %v1839
  %vm1841 = vweird.f32 %v1830
  %vm1842 = vweird.f32 %v1836
  %vm1843 = vmor %vm1841, %vm1842
  %v1844 = vsel %vm1843, %v1836, %v1840
  %v1845 = vand.u32 2147483647, %v1830
  %vm1846 = vcmp.eq.f32.partialorder %v1845, 8.507059e+37
  %v1847 = vand.u32 %v1830, 2147483648
  %v1848 = vor.u32 1.1754944e-38, %v1847
  %v1849 = vsel %vm1846, %v1848, %v1844
  %v1850 = vmul.f32 1.0, %v1849
  %v1851 = vrcp.pop %v1831
  %v1852 = vmul.f32 %v1831, %v1851
  %v1853 = vsub.f32 1.0, %v1852
  %v1854 = vmul.f32 %v1851, %v1853
  %v1855 = vadd.f32 %v1851, %v1854
  %vm1856 = vweird.f32 %v1831
  %vm1857 = vweird.f32 %v1851
  %vm1858 = vmor %vm1856, %vm1857
  %v1859 = vsel %vm1858, %v1851, %v1855
  %v1860 = vand.u32 2147483647, %v1831
  %vm1861 = vcmp.eq.f32.partialorder %v1860, 8.507059e+37
  %v1862 = vand.u32 %v1831, 2147483648
  %v1863 = vor.u32 1.1754944e-38, %v1862
  %v1864 = vsel %vm1861, %v1863, %v1859
  %v1865 = vmul.f32 1.0, %v1864
  %v1866 = vrcp.pop %v1832
  %v1867 = vmul.f32 %v1832, %v1866
  %v1868 = vsub.f32 1.0, %v1867
  %v1869 = vmul.f32 %v1866, %v1868
  %v1870 = vadd.f32 %v1866, %v1869
  %vm1871 = vweird.f32 %v1832
  %vm1872 = vweird.f32 %v1866
  %vm1873 = vmor %vm1871, %vm1872
  %v1874 = vsel %vm1873, %v1866, %v1870
  %v1875 = vand.u32 2147483647, %v1832
  %vm1876 = vcmp.eq.f32.partialorder %v1875, 8.507059e+37
  %v1877 = vand.u32 %v1832, 2147483648
  %v1878 = vor.u32 1.1754944e-38, %v1877
  %v1879 = vsel %vm1876, %v1878, %v1874
  %v1880 = vmul.f32 1.0, %v1879
  %v1881 = vrcp.pop %v1833
  %v1882 = vmul.f32 %v1833, %v1881
  %v1883 = vsub.f32 1.0, %v1882
  %v1884 = vmul.f32 %v1881, %v1883
  %v1885 = vadd.f32 %v1881, %v1884
  %vm1886 = vweird.f32 %v1833
  %vm1887 = vweird.f32 %v1881
  %vm1888 = vmor %vm1886, %vm1887
  %v1889 = vsel %vm1888, %v1881, %v1885
  %v1890 = vand.u32 2147483647, %v1833
  %vm1891 = vcmp.eq.f32.partialorder %v1890, 8.507059e+37
  %v1892 = vand.u32 %v1833, 2147483648
  %v1893 = vor.u32 1.1754944e-38, %v1892
  %v1894 = vsel %vm1891, %v1893, %v1889
  %v1895 = vmul.f32 1.0, %v1894
  %v1896 = vrcp.pop %v1834
  %v1897 = vmul.f32 %v1834, %v1896
  %v1898 = vsub.f32 1.0, %v1897
  %v1899 = vmul.f32 %v1896, %v1898
  %v1900 = vadd.f32 %v1896, %v1899
  %vm1901 = vweird.f32 %v1834
  %vm1902 = vweird.f32 %v1896
  %vm1903 = vmor %vm1901, %vm1902
  %v1904 = vsel %vm1903, %v1896, %v1900
  %v1905 = vand.u32 2147483647, %v1834
  %vm1906 = vcmp.eq.f32.partialorder %v1905, 8.507059e+37
  %v1907 = vand.u32 %v1834, 2147483648
  %v1908 = vor.u32 1.1754944e-38, %v1907
  %v1909 = vsel %vm1906, %v1908, %v1904
  %v1910 = vmul.f32 1.0, %v1909
  %v1911 = vrcp.pop %v1835
  %v1912 = vmul.f32 %v1835, %v1911
  %v1913 = vsub.f32 1.0, %v1912
  %v1914 = vmul.f32 %v1911, %v1913
  %v1915 = vadd.f32 %v1911, %v1914
  %vm1916 = vweird.f32 %v1835
  %vm1917 = vweird.f32 %v1911
  %vm1918 = vmor %vm1916, %vm1917
  %v1919 = vsel %vm1918, %v1911, %v1915
  %v1920 = vand.u32 2147483647, %v1835
  %vm1921 = vcmp.eq.f32.partialorder %v1920, 8.507059e+37
  %v1922 = vand.u32 %v1835, 2147483648
  %v1923 = vor.u32 1.1754944e-38, %v1922
  %v1924 = vsel %vm1921, %v1923, %v1919
  %v1925 = vmul.f32 1.0, %v1924
  %v1926 = vtanh.pop %v1807
  %v1927 = vtanh.pop %v1811
  %v1930 = vrot.slane %v1690, 7
  %v1931 = vrot.slane %v1691, 7
  %v1934 = vmul.f32 %v1865, %v1930
  %v1935 = vmul.f32 %v1910, %v1931
  %v1936 = vmul.f32 %v1850, %v1926
  %v1937 = vmul.f32 %v1895, %v1927
  %v1938 = vadd.f32 %v1934, %v1936
  %v1939 = vadd.f32 %v1935, %v1937
  %v1940 = vtanh.pop %v1938
  %v1941 = vtanh.pop %v1939
  %v1942 = vmul.f32 %v1880, %v1940
  %v1943 = vmul.f32 %v1925, %v1941
  %1944 = vst [vmem:[%s6] sm:$0x40] %v1942
  %1945 = vst [vmem:[%s6 + $0x8] sm:$0x40] %v1943
  %v1948 = vrot.slane %v1942, 6
  %v1949 = vrot.slane %v1943, 5
  %v1950 = vsel %vm466, %v1949, %v1948
  %1952 = vmatpush.msra.mxu0 %v96
  %1953 = vmatpush.msra.mxu0 %v92
  %1954 = vmatpush.msra.mxu0 %v88
  %1955 = vmatpush.msra.mxu0 %v84
  %1956 = vmatpush.msra.mxu0 %v80
  %1957 = vmatpush.msra.mxu0 %v76
  %1958 = vmatpush.msra.mxu0 %v72
  %1959 = vmatpush.msra.mxu0 %v68
  %1960 = vmatpush.msra.mxu0 %v64
  %1961 = vmatpush.msra.mxu0 %v60
  %1962 = vmatpush.msra.mxu0 %v56
  %1963 = vmatpush.msra.mxu0 %v52
  %1964 = vmatpush.msra.mxu0 %v48
  %1965 = vmatpush.msra.mxu0 %v44
  %1966 = vmatpush.msra.mxu0 %v40
  %1967 = vmatpush.msra.mxu0 %v36
  %1968 = vmatmul.f32.gmra.mxu0 %v1950
  %v1969 = vpop.f32.mrf.mxu0
  %v1970 = vadd.f32 0.0, %v1969
  %1971 = vdwg.mxu0
  %1972 = vmatpush.msra.mxu0 %v97
  %1973 = vmatpush.msra.mxu0 %v93
  %1974 = vmatpush.msra.mxu0 %v89
  %1975 = vmatpush.msra.mxu0 %v85
  %1976 = vmatpush.msra.mxu0 %v81
  %1977 = vmatpush.msra.mxu0 %v77
  %1978 = vmatpush.msra.mxu0 %v73
  %1979 = vmatpush.msra.mxu0 %v69
  %1980 = vmatpush.msra.mxu0 %v65
  %1981 = vmatpush.msra.mxu0 %v61
  %1982 = vmatpush.msra.mxu0 %v57
  %1983 = vmatpush.msra.mxu0 %v53
  %1984 = vmatpush.msra.mxu0 %v49
  %1985 = vmatpush.msra.mxu0 %v45
  %1986 = vmatpush.msra.mxu0 %v41
  %1987 = vmatpush.msra.mxu0 %v37
  %1988 = vmatmul.f32.gmra.mxu0 %v1950
  %v1989 = vpop.f32.mrf.mxu0
  %v1990 = vadd.f32 0.0, %v1989
  %1991 = vdwg.mxu0
  %1992 = vmatpush.msra.mxu0 %v98
  %1993 = vmatpush.msra.mxu0 %v94
  %1994 = vmatpush.msra.mxu0 %v90
  %1995 = vmatpush.msra.mxu0 %v86
  %1996 = vmatpush.msra.mxu0 %v82
  %1997 = vmatpush.msra.mxu0 %v78
  %1998 = vmatpush.msra.mxu0 %v74
  %1999 = vmatpush.msra.mxu0 %v70
  %2000 = vmatpush.msra.mxu0 %v66
  %2001 = vmatpush.msra.mxu0 %v62
  %2002 = vmatpush.msra.mxu0 %v58
  %2003 = vmatpush.msra.mxu0 %v54
  %2004 = vmatpush.msra.mxu0 %v50
  %2005 = vmatpush.msra.mxu0 %v46
  %2006 = vmatpush.msra.mxu0 %v42
  %2007 = vmatpush.msra.mxu0 %v38
  %2008 = vmatmul.f32.gmra.mxu0 %v1950
  %v2009 = vpop.f32.mrf.mxu0
  %v2010 = vadd.f32 0.0, %v2009
  %2011 = vdwg.mxu0
  %2012 = vmatpush.msra.mxu0 %v99
  %2013 = vmatpush.msra.mxu0 %v95
  %2014 = vmatpush.msra.mxu0 %v91
  %2015 = vmatpush.msra.mxu0 %v87
  %2016 = vmatpush.msra.mxu0 %v83
  %2017 = vmatpush.msra.mxu0 %v79
  %2018 = vmatpush.msra.mxu0 %v75
  %2019 = vmatpush.msra.mxu0 %v71
  %2020 = vmatpush.msra.mxu0 %v67
  %2021 = vmatpush.msra.mxu0 %v63
  %2022 = vmatpush.msra.mxu0 %v59
  %2023 = vmatpush.msra.mxu0 %v55
  %2024 = vmatpush.msra.mxu0 %v51
  %2025 = vmatpush.msra.mxu0 %v47
  %2026 = vmatpush.msra.mxu0 %v43
  %2027 = vmatpush.msra.mxu0 %v39
  %2028 = vmatmul.f32.gmra.mxu0 %v1950
  %v2029 = vpop.f32.mrf.mxu0
  %v2030 = vadd.f32 0.0, %v2029
  %2031 = vdwg.mxu0
  %v2036 = vrot.slane %v1970, 1
  %v2037 = vrot.slane %v1990, 1
  %v2038 = vrot.slane %v2010, 1
  %v2039 = vrot.slane %v2030, 1
  %v2040 = vrot.slane %v1970, 2
  %v2041 = vrot.slane %v1990, 2
  %v2042 = vrot.slane %v2010, 2
  %v2043 = vrot.slane %v2030, 2
  %v2052 = vadd.f32 %v153, %v2036
  %v2053 = vadd.f32 %v176, %v2037
  %v2054 = vadd.f32 %v199, %v2038
  %v2055 = vadd.f32 %v222, %v2039
  %v2056 = vadd.f32 %v156, %v2040
  %v2057 = vadd.f32 %v179, %v2041
  %v2058 = vadd.f32 %v202, %v2042
  %v2059 = vadd.f32 %v225, %v2043
  %v2060 = vxor.u32 %v2052, 2147483648
  %v2061 = vxor.u32 %v2053, 2147483648
  %v2062 = vxor.u32 %v2054, 2147483648
  %v2063 = vxor.u32 %v2056, 2147483648
  %v2064 = vxor.u32 %v2057, 2147483648
  %v2065 = vxor.u32 %v2058, 2147483648
  %v2066 = vmul.f32 %v2060, 1.442695
  %v2067 = vpow.pop %v2066
  %v2068 = vmul.f32 %v2061, 1.442695
  %v2069 = vpow.pop %v2068
  %v2070 = vmul.f32 %v2062, 1.442695
  %v2071 = vpow.pop %v2070
  %v2072 = vmul.f32 %v2063, 1.442695
  %v2073 = vpow.pop %v2072
  %v2074 = vmul.f32 %v2064, 1.442695
  %v2075 = vpow.pop %v2074
  %v2076 = vmul.f32 %v2065, 1.442695
  %v2077 = vpow.pop %v2076
  %v2078 = vadd.f32 %v2067, 1.0
  %v2079 = vadd.f32 %v2069, 1.0
  %v2080 = vadd.f32 %v2071, 1.0
  %v2081 = vadd.f32 %v2073, 1.0
  %v2082 = vadd.f32 %v2075, 1.0
  %v2083 = vadd.f32 %v2077, 1.0
  %v2084 = vrcp.pop %v2078
  %v2085 = vmul.f32 %v2078, %v2084
  %v2086 = vsub.f32 1.0, %v2085
  %v2087 = vmul.f32 %v2084, %v2086
  %v2088 = vadd.f32 %v2084, %v2087
  %vm2089 = vweird.f32 %v2078
  %vm2090 = vweird.f32 %v2084
  %vm2091 = vmor %vm2089, %vm2090
  %v2092 = vsel %vm2091, %v2084, %v2088
  %v2093 = vand.u32 2147483647, %v2078
  %vm2094 = vcmp.eq.f32.partialorder %v2093, 8.507059e+37
  %v2095 = vand.u32 %v2078, 2147483648
  %v2096 = vor.u32 1.1754944e-38, %v2095
  %v2097 = vsel %vm2094, %v2096, %v2092
  %v2098 = vmul.f32 1.0, %v2097
  %v2099 = vrcp.pop %v2079
  %v2100 = vmul.f32 %v2079, %v2099
  %v2101 = vsub.f32 1.0, %v2100
  %v2102 = vmul.f32 %v2099, %v2101
  %v2103 = vadd.f32 %v2099, %v2102
  %vm2104 = vweird.f32 %v2079
  %vm2105 = vweird.f32 %v2099
  %vm2106 = vmor %vm2104, %vm2105
  %v2107 = vsel %vm2106, %v2099, %v2103
  %v2108 = vand.u32 2147483647, %v2079
  %vm2109 = vcmp.eq.f32.partialorder %v2108, 8.507059e+37
  %v2110 = vand.u32 %v2079, 2147483648
  %v2111 = vor.u32 1.1754944e-38, %v2110
  %v2112 = vsel %vm2109, %v2111, %v2107
  %v2113 = vmul.f32 1.0, %v2112
  %v2114 = vrcp.pop %v2080
  %v2115 = vmul.f32 %v2080, %v2114
  %v2116 = vsub.f32 1.0, %v2115
  %v2117 = vmul.f32 %v2114, %v2116
  %v2118 = vadd.f32 %v2114, %v2117
  %vm2119 = vweird.f32 %v2080
  %vm2120 = vweird.f32 %v2114
  %vm2121 = vmor %vm2119, %vm2120
  %v2122 = vsel %vm2121, %v2114, %v2118
  %v2123 = vand.u32 2147483647, %v2080
  %vm2124 = vcmp.eq.f32.partialorder %v2123, 8.507059e+37
  %v2125 = vand.u32 %v2080, 2147483648
  %v2126 = vor.u32 1.1754944e-38, %v2125
  %v2127 = vsel %vm2124, %v2126, %v2122
  %v2128 = vmul.f32 1.0, %v2127
  %v2129 = vrcp.pop %v2081
  %v2130 = vmul.f32 %v2081, %v2129
  %v2131 = vsub.f32 1.0, %v2130
  %v2132 = vmul.f32 %v2129, %v2131
  %v2133 = vadd.f32 %v2129, %v2132
  %vm2134 = vweird.f32 %v2081
  %vm2135 = vweird.f32 %v2129
  %vm2136 = vmor %vm2134, %vm2135
  %v2137 = vsel %vm2136, %v2129, %v2133
  %v2138 = vand.u32 2147483647, %v2081
  %vm2139 = vcmp.eq.f32.partialorder %v2138, 8.507059e+37
  %v2140 = vand.u32 %v2081, 2147483648
  %v2141 = vor.u32 1.1754944e-38, %v2140
  %v2142 = vsel %vm2139, %v2141, %v2137
  %v2143 = vmul.f32 1.0, %v2142
  %v2144 = vrcp.pop %v2082
  %v2145 = vmul.f32 %v2082, %v2144
  %v2146 = vsub.f32 1.0, %v2145
  %v2147 = vmul.f32 %v2144, %v2146
  %v2148 = vadd.f32 %v2144, %v2147
  %vm2149 = vweird.f32 %v2082
  %vm2150 = vweird.f32 %v2144
  %vm2151 = vmor %vm2149, %vm2150
  %v2152 = vsel %vm2151, %v2144, %v2148
  %v2153 = vand.u32 2147483647, %v2082
  %vm2154 = vcmp.eq.f32.partialorder %v2153, 8.507059e+37
  %v2155 = vand.u32 %v2082, 2147483648
  %v2156 = vor.u32 1.1754944e-38, %v2155
  %v2157 = vsel %vm2154, %v2156, %v2152
  %v2158 = vmul.f32 1.0, %v2157
  %v2159 = vrcp.pop %v2083
  %v2160 = vmul.f32 %v2083, %v2159
  %v2161 = vsub.f32 1.0, %v2160
  %v2162 = vmul.f32 %v2159, %v2161
  %v2163 = vadd.f32 %v2159, %v2162
  %vm2164 = vweird.f32 %v2083
  %vm2165 = vweird.f32 %v2159
  %vm2166 = vmor %vm2164, %vm2165
  %v2167 = vsel %vm2166, %v2159, %v2163
  %v2168 = vand.u32 2147483647, %v2083
  %vm2169 = vcmp.eq.f32.partialorder %v2168, 8.507059e+37
  %v2170 = vand.u32 %v2083, 2147483648
  %v2171 = vor.u32 1.1754944e-38, %v2170
  %v2172 = vsel %vm2169, %v2171, %v2167
  %v2173 = vmul.f32 1.0, %v2172
  %v2174 = vtanh.pop %v2055
  %v2175 = vtanh.pop %v2059
  %v2178 = vrot.slane %v1938, 7
  %v2179 = vrot.slane %v1939, 7
  %v2182 = vmul.f32 %v2113, %v2178
  %v2183 = vmul.f32 %v2158, %v2179
  %v2184 = vmul.f32 %v2098, %v2174
  %v2185 = vmul.f32 %v2143, %v2175
  %v2186 = vadd.f32 %v2182, %v2184
  %v2187 = vadd.f32 %v2183, %v2185
  %v2188 = vtanh.pop %v2186
  %v2189 = vtanh.pop %v2187
  %v2190 = vmul.f32 %v2128, %v2188
  %v2191 = vmul.f32 %v2173, %v2189
  %2192 = vst [vmem:[%s6] sm:$0x80] %v2190
  %2193 = vst [vmem:[%s6 + $0x8] sm:$0x80] %v2191
  %v2196 = vrot.slane %v2191, 7
  %2199 = vst [vmem:[#allocation2 - $0x7] sm:$0x80] %v2190
  %2200 = vst [vmem:[#allocation2 + $0x1] sm:$0x1] %v2196
  %v2203 = vrot.slane %v2187, 7
  %2206 = vst [vmem:[#allocation3 - $0x7] sm:$0x80] %v2186
  %2207 = vst [vmem:[#allocation3 + $0x1] sm:$0x1] %v2203
  // Predicated region
  $region30: #{lm_forward.2} parent=0 // pred_check
    %p2208 = pneg %p26
  $region31: #{lm_forward.2} parent=0 // pred_check_branch
    %2210 = sbr.rel (%p2208) target = $region33
  $region32: #{lm_forward.2} parent=0 // pred_region
    %2211 = vst [vmem:[%s7 - $0x7] sm:$0x80] %v2190
    %2212 = vst [vmem:[%s7 + $0x1] sm:$0x1] %v2196
    %2213 = vst [vmem:[%s8 - $0x7] sm:$0x80] %v2186
    %2214 = vst [vmem:[%s8 + $0x1] sm:$0x1] %v2203
  $region33: #{lm_forward.2} parent=0 // pred_fallthru
    _
  // Predicated region
  $region34: #{lm_forward.2} parent=0 // pred_check
    _
  $region35: #{lm_forward.2} parent=0 // pred_check_branch
    %2216 = sbr.rel (0) target = $region37
  $region36: #{lm_forward.2} parent=0 // pred_region
    _
  $region37: #{lm_forward.2} parent=0 // pred_fallthru
    _
  // Predicated region
  $region38: #{lm_forward.2} parent=0 // pred_check
    _
  $region39: #{lm_forward.2} parent=0 // pred_check_branch
    %2218 = sbr.rel (0) target = $region41
  $region40: #{lm_forward.2} parent=0 // pred_region
    _
  $region41: #{lm_forward.2} parent=0 // pred_fallthru
    _
  // Predicated region
  $region42: #{lm_forward.2} parent=0 // pred_check
    _
  $region43: #{lm_forward.2} parent=0 // pred_check_branch
    %2220 = sbr.rel (0) target = $region45
  $region44: #{lm_forward.2} parent=0 // pred_region
    _
  $region45: #{lm_forward.2} parent=0 // pred_fallthru
    _
  // Predicated region
  $region46: #{lm_forward.2} parent=0 // pred_check
    _
  $region47: #{lm_forward.2} parent=0 // pred_check_branch
    %2222 = sbr.rel (0) target = $region49
  $region48: #{lm_forward.2} parent=0 // pred_region
    _
  $region49: #{lm_forward.2} parent=0 // pred_fallthru
    _
  // Predicated region
  $region50: #{lm_forward.2} parent=0 // pred_check
    _
  $region51: #{lm_forward.2} parent=0 // pred_check_branch
    %2224 = sbr.rel (0) target = $region53
  $region52: #{lm_forward.2} parent=0 // pred_region
    _
  $region53: #{lm_forward.2} parent=0 // pred_fallthru
    _
  // Predicated region
  $region54: #{lm_forward.2} parent=0 // pred_check
    _
  $region55: #{lm_forward.2} parent=0 // pred_check_branch
    %2226 = sbr.rel (0) target = $region57
  $region56: #{lm_forward.2} parent=0 // pred_region
    _
  $region57: #{lm_forward.2} parent=0 // pred_fallthru
    _

</llo_original>
